<compile_context>
chip_gen: v6e
topology: v6e:2x2x1
jax: 0.10.0
libtpu: 0.0.40
codegen_flags: <defaults>
</compile_context>

<pallas_src>
import functools

import jax
import jax.numpy as jnp
import numpy as np
from jax import lax
from jax.experimental import pallas as pl
from jax.experimental.pallas import tpu as pltpu


# ---------------------------------------------------------------------------
# Fused decoder-layer kernel (one grid step == one batch element)
# ---------------------------------------------------------------------------
def _decoder_layer_kernel(tgt_ref, mem_ref,
                          sa_wt_ref, sa_b_ref, sa_owt_ref, sa_ob_ref,
                          ca_wt_ref, ca_b_ref, ca_owt_ref, ca_ob_ref,
                          w1t_ref, b1_ref, w2t_ref, b2_ref,
                          rw_ref, out_ref, *, nhead):
    _, L, E = tgt_ref.shape
    S = mem_ref.shape[1]
    H = nhead
    Dh = E // H
    scale = 1.0 / float(Dh) ** 0.5
    rw = rw_ref[0]                      # ReZero residual weight (scalar, SMEM)

    x = tgt_ref[0].astype(jnp.float32)      # (L, E) — this batch element
    mem = mem_ref[0].astype(jnp.float32)    # (S, E)

    def mha(q_in, kv_in, wt_ref, b_ref, owt_ref, ob_ref, residual, *, fused_qkv):
        wt = wt_ref[...]                    # (E, 3E), pre-transposed
        b = b_ref[...]                      # (1, 3E)
        if fused_qkv:
            # q == k == v input: one (rows, E) @ (E, 3E) GEMM for all projections.
            qkv = jnp.dot(q_in, wt, preferred_element_type=jnp.float32) + b
            q = qkv[:, :E]
            k = qkv[:, E:2 * E]
            v = qkv[:, 2 * E:]
        else:
            q = jnp.dot(q_in, wt[:, :E], preferred_element_type=jnp.float32) + b[:, :E]
            kv = jnp.dot(kv_in, wt[:, E:], preferred_element_type=jnp.float32) + b[:, E:]
            k = kv[:, :E]
            v = kv[:, E:]

        heads = []
        for h in range(H):                   # static unroll; head split via lane slices
            sl = slice(h * Dh, (h + 1) * Dh)
            qh = q[:, sl]                    # (Lq, Dh)
            kh = k[:, sl]                    # (Lk, Dh)
            vh = v[:, sl]                    # (Lk, Dh)
            s = lax.dot_general(qh, kh, (((1,), (1,)), ((), ())),
                                preferred_element_type=jnp.float32) * scale   # (Lq, Lk)
            m = jnp.max(s, axis=-1, keepdims=True)
            p = jnp.exp(s - m)
            denom = jnp.sum(p, axis=-1, keepdims=True)
            p = p * pl.reciprocal(denom, approx=True)
            heads.append(jnp.dot(p, vh, preferred_element_type=jnp.float32))  # (Lq, Dh)

        o = jnp.concatenate(heads, axis=-1)                                   # (Lq, E)
        proj = jnp.dot(o, owt_ref[...], preferred_element_type=jnp.float32) + ob_ref[...]
        return residual + rw * proj          # fused ReZero residual epilogue

    # self-attention + ReZero residual
    x = mha(x, x, sa_wt_ref, sa_b_ref, sa_owt_ref, sa_ob_ref, x, fused_qkv=True)
    # cross-attention (q from x, k/v from encoder memory) + ReZero residual
    x = mha(x, mem, ca_wt_ref, ca_b_ref, ca_owt_ref, ca_ob_ref, x, fused_qkv=False)
    # feed-forward + ReZero residual
    h1 = jnp.dot(x, w1t_ref[...], preferred_element_type=jnp.float32) + b1_ref[...]
    h1 = jnp.maximum(h1, 0.0)
    y = jnp.dot(h1, w2t_ref[...], preferred_element_type=jnp.float32) + b2_ref[...]
    x = x + rw * y

    out_ref[0] = x.astype(out_ref.dtype)


# ---------------------------------------------------------------------------
# Host wrapper: one pallas_call for the whole layer
# ---------------------------------------------------------------------------
@functools.partial(jax.jit, static_argnames=("nhead",))
def rztx_decoder_layer(tgt, memory, params, *, nhead):
    L, B, E = tgt.shape
    S = memory.shape[0]
    FF = params["w1_t"].shape[1]

    # seq-major (L,B,E) -> batch-major (B,L,E): one tiny XLA transpose at the boundary,
    # so each grid step owns a contiguous (L,E) / (S,E) slab.
    tgt_b = jnp.transpose(tgt, (1, 0, 2))
    mem_b = jnp.transpose(memory, (1, 0, 2))

    out_b = pl.pallas_call(
        functools.partial(_decoder_layer_kernel, nhead=nhead),
        out_shape=jax.ShapeDtypeStruct((B, L, E), tgt.dtype),
        grid=(B,),
        in_specs=[
            pl.BlockSpec((1, L, E), lambda b: (b, 0, 0)),        # tgt (per batch)
            pl.BlockSpec((1, S, E), lambda b: (b, 0, 0)),        # memory (per batch)
            pl.BlockSpec((E, 3 * E), lambda b: (0, 0)),          # self-attn in_proj W^T
            pl.BlockSpec((1, 3 * E), lambda b: (0, 0)),          # self-attn in_proj bias
            pl.BlockSpec((E, E), lambda b: (0, 0)),              # self-attn out_proj W^T
            pl.BlockSpec((1, E), lambda b: (0, 0)),              # self-attn out_proj bias
            pl.BlockSpec((E, 3 * E), lambda b: (0, 0)),          # cross-attn in_proj W^T
            pl.BlockSpec((1, 3 * E), lambda b: (0, 0)),          # cross-attn in_proj bias
            pl.BlockSpec((E, E), lambda b: (0, 0)),              # cross-attn out_proj W^T
            pl.BlockSpec((1, E), lambda b: (0, 0)),              # cross-attn out_proj bias
            pl.BlockSpec((E, FF), lambda b: (0, 0)),             # linear1 W^T
            pl.BlockSpec((1, FF), lambda b: (0, 0)),             # linear1 bias
            pl.BlockSpec((FF, E), lambda b: (0, 0)),             # linear2 W^T
            pl.BlockSpec((1, E), lambda b: (0, 0)),              # linear2 bias
            pl.BlockSpec(memory_space=pltpu.MemorySpace.SMEM),   # resweight scalar
        ],
        out_specs=pl.BlockSpec((1, L, E), lambda b: (b, 0, 0)),
        compiler_params=pltpu.CompilerParams(dimension_semantics=("parallel",)),
    )(tgt_b, mem_b,
      params["sa_in_wt"], params["sa_in_b"], params["sa_out_wt"], params["sa_out_b"],
      params["ca_in_wt"], params["ca_in_b"], params["ca_out_wt"], params["ca_out_b"],
      params["w1_t"], params["b1"], params["w2_t"], params["b2"],
      params["resweight"])

    return jnp.transpose(out_b, (1, 0, 2))   # back to (L, B, E)


# ---------------------------------------------------------------------------
# Pure-JAX reference for verification (PyTorch nn.MultiheadAttention semantics)
# ---------------------------------------------------------------------------
def rztx_reference(tgt, memory, params, *, nhead):
    H = nhead
    rw = params["resweight"][0]

    def mha_ref(q_in, kv_in, wt, b, owt, ob):
        L, B, E = q_in.shape
        S = kv_in.shape[0]
        Dh = E // H
        q = q_in @ wt[:, :E] + b[:, :E]
        k = kv_in @ wt[:, E:2 * E] + b[:, E:2 * E]
        v = kv_in @ wt[:, 2 * E:] + b[:, 2 * E:]
        q = q * (float(Dh) ** -0.5)
        qh = q.reshape(L, B, H, Dh).transpose(1, 2, 0, 3)
        kh = k.reshape(S, B, H, Dh).transpose(1, 2, 0, 3)
        vh = v.reshape(S, B, H, Dh).transpose(1, 2, 0, 3)
        s = jnp.einsum("bhld,bhsd->bhls", qh, kh)
        p = jax.nn.softmax(s, axis=-1)
        o = jnp.einsum("bhls,bhsd->bhld", p, vh)
        o = o.transpose(2, 0, 1, 3).reshape(L, B, E)
        return o @ owt + ob

    x = tgt + rw * mha_ref(tgt, tgt, params["sa_in_wt"], params["sa_in_b"],
                           params["sa_out_wt"], params["sa_out_b"])
    x = x + rw * mha_ref(x, memory, params["ca_in_wt"], params["ca_in_b"],
                         params["ca_out_wt"], params["ca_out_b"])
    h = jax.nn.relu(x @ params["w1_t"] + params["b1"])
    x = x + rw * (h @ params["w2_t"] + params["b2"])
    return x


# ---------------------------------------------------------------------------
def make_params(key, d_model, nhead, dim_feedforward):
    ks = jax.random.split(key, 8)
    std = 0.05
    f32 = jnp.float32
    E = d_model

    def rnd(k, shape):
        return (jax.random.normal(k, shape) * std).astype(f32)

    # Weights stored pre-transposed (in_features, out_features) so the kernel contracts
    # without any wrapper-side transpose; biases stored as (1, N) 2-D rows.
    return {
        "sa_in_wt": rnd(ks[0], (E, 3 * E)),
        "sa_in_b": jnp.zeros((1, 3 * E), f32),
        "sa_out_wt": rnd(ks[1], (E, E)),
        "sa_out_b": jnp.zeros((1, E), f32),
        "ca_in_wt": rnd(ks[2], (E, 3 * E)),
        "ca_in_b": jnp.zeros((1, 3 * E), f32),
        "ca_out_wt": rnd(ks[3], (E, E)),
        "ca_out_b": jnp.zeros((1, E), f32),
        "w1_t": rnd(ks[4], (E, dim_feedforward)),
        "b1": rnd(ks[5], (1, dim_feedforward)),
        "w2_t": rnd(ks[6], (dim_feedforward, E)),
        "b2": rnd(ks[7], (1, E)),
        # PyTorch inits resweight to 0 (layer would be identity); use 0.5 to exercise compute.
        "resweight": jnp.array([0.5], f32),
    }


if __name__ == "__main__":
    L, S, B = 8, 16, 2          # tgt seq len, memory seq len, batch
    d_model, nhead, dim_ff = 32, 4, 64

    key = jax.random.PRNGKey(0)
    k_t, k_m, k_p = jax.random.split(key, 3)
    tgt = jax.random.normal(k_t, (L, B, d_model), jnp.float32)
    memory = jax.random.normal(k_m, (S, B, d_model), jnp.float32)
    params = make_params(k_p, d_model, nhead, dim_ff)

    out = rztx_decoder_layer(tgt, memory, params, nhead=nhead)
    out = jax.block_until_ready(out)

    ref = jax.block_until_ready(rztx_reference(tgt, memory, params, nhead=nhead))
    assert out.shape == (L, B, d_model) and out.dtype == jnp.float32
    np.testing.assert_allclose(np.asarray(out), np.asarray(ref), rtol=1e-2, atol=1e-2)

    print("KERNEL_OK")
</pallas_src>

<mosaic_0001>
module attributes {stable_mosaic.version = 11 : i64} {
  func.func @_decoder_layer_kernel(%arg0: i32, %arg1: memref<1x8x32xf32, #tpu.memory_space<vmem>>, %arg2: memref<1x16x32xf32, #tpu.memory_space<vmem>>, %arg3: memref<32x96xf32, #tpu.memory_space<vmem>>, %arg4: memref<1x96xf32, #tpu.memory_space<vmem>>, %arg5: memref<32x32xf32, #tpu.memory_space<vmem>>, %arg6: memref<1x32xf32, #tpu.memory_space<vmem>>, %arg7: memref<32x96xf32, #tpu.memory_space<vmem>>, %arg8: memref<1x96xf32, #tpu.memory_space<vmem>>, %arg9: memref<32x32xf32, #tpu.memory_space<vmem>>, %arg10: memref<1x32xf32, #tpu.memory_space<vmem>>, %arg11: memref<32x64xf32, #tpu.memory_space<vmem>>, %arg12: memref<1x64xf32, #tpu.memory_space<vmem>>, %arg13: memref<64x32xf32, #tpu.memory_space<vmem>>, %arg14: memref<1x32xf32, #tpu.memory_space<vmem>>, %arg15: memref<1xf32, #tpu.memory_space<smem>>, %arg16: memref<1x8x32xf32, #tpu.memory_space<vmem>>) attributes {dimension_semantics = [#tpu.dimension_semantics<parallel>], iteration_bounds = array<i64: 2>, scalar_prefetch = 0 : i64, scratch_operands = 0 : i64, tpu.core_type = #tpu.core_type<tc>, window_params = [{transform_indices = @transform_0, window_bounds = array<i64: 1, 8, 32>}, {transform_indices = @transform_1, window_bounds = array<i64: 1, 16, 32>}, {pipeline_mode = #tpu.pipeline_mode<synchronous>, transform_indices = @transform_2, window_bounds = array<i64: 32, 96>}, {pipeline_mode = #tpu.pipeline_mode<synchronous>, transform_indices = @transform_3, window_bounds = array<i64: 1, 96>}, {pipeline_mode = #tpu.pipeline_mode<synchronous>, transform_indices = @transform_4, window_bounds = array<i64: 32, 32>}, {pipeline_mode = #tpu.pipeline_mode<synchronous>, transform_indices = @transform_5, window_bounds = array<i64: 1, 32>}, {pipeline_mode = #tpu.pipeline_mode<synchronous>, transform_indices = @transform_6, window_bounds = array<i64: 32, 96>}, {pipeline_mode = #tpu.pipeline_mode<synchronous>, transform_indices = @transform_7, window_bounds = array<i64: 1, 96>}, {pipeline_mode = #tpu.pipeline_mode<synchronous>, transform_indices = @transform_8, window_bounds = array<i64: 32, 32>}, {pipeline_mode = #tpu.pipeline_mode<synchronous>, transform_indices = @transform_9, window_bounds = array<i64: 1, 32>}, {pipeline_mode = #tpu.pipeline_mode<synchronous>, transform_indices = @transform_10, window_bounds = array<i64: 32, 64>}, {pipeline_mode = #tpu.pipeline_mode<synchronous>, transform_indices = @transform_11, window_bounds = array<i64: 1, 64>}, {pipeline_mode = #tpu.pipeline_mode<synchronous>, transform_indices = @transform_12, window_bounds = array<i64: 64, 32>}, {pipeline_mode = #tpu.pipeline_mode<synchronous>, transform_indices = @transform_13, window_bounds = array<i64: 1, 32>}, {transform_indices = @transform_14, window_bounds = array<i64: 1>}, {transform_indices = @transform_15, window_bounds = array<i64: 1, 8, 32>}]} {
    %c0 = arith.constant 0 : index
    %0 = memref.load %arg15[%c0] : memref<1xf32, #tpu.memory_space<smem>>
    %c0_0 = arith.constant 0 : index
    %c0_1 = arith.constant 0 : index
    %c0_2 = arith.constant 0 : index
    %1 = vector.load %arg1[%c0_0, %c0_1, %c0_2] : memref<1x8x32xf32, #tpu.memory_space<vmem>>, vector<1x8x32xf32>
    %2 = vector.shape_cast %1 : vector<1x8x32xf32> to vector<8x32xf32>
    %c0_3 = arith.constant 0 : index
    %c0_4 = arith.constant 0 : index
    %c0_5 = arith.constant 0 : index
    %3 = vector.load %arg2[%c0_3, %c0_4, %c0_5] : memref<1x16x32xf32, #tpu.memory_space<vmem>>, vector<1x16x32xf32>
    %4 = vector.shape_cast %3 : vector<1x16x32xf32> to vector<16x32xf32>
    %c0_6 = arith.constant 0 : index
    %c0_7 = arith.constant 0 : index
    %5 = vector.load %arg3[%c0_6, %c0_7] : memref<32x96xf32, #tpu.memory_space<vmem>>, vector<32x96xf32>
    %c0_8 = arith.constant 0 : index
    %c0_9 = arith.constant 0 : index
    %6 = vector.load %arg4[%c0_8, %c0_9] : memref<1x96xf32, #tpu.memory_space<vmem>>, vector<1x96xf32>
    %cst = arith.constant dense<0.000000e+00> : vector<8x96xf32>
    %7 = tpu.matmul %2, %5, %cst {dimension_numbers = #tpu.dot_dimension_numbers<[1], [0], [0], [1], [0, 0, 1, 1], [], []>} : vector<8x32xf32>, vector<32x96xf32>, vector<8x96xf32> -> vector<8x96xf32>
    %8 = vector.broadcast %6 : vector<1x96xf32> to vector<8x96xf32>
    %9 = arith.addf %7, %8 : vector<8x96xf32>
    %10 = vector.extract_strided_slice %9 {offsets = [0, 0], sizes = [8, 32], strides = [1, 1]} : vector<8x96xf32> to vector<8x32xf32>
    %11 = vector.extract_strided_slice %9 {offsets = [0, 32], sizes = [8, 32], strides = [1, 1]} : vector<8x96xf32> to vector<8x32xf32>
    %12 = vector.extract_strided_slice %9 {offsets = [0, 64], sizes = [8, 32], strides = [1, 1]} : vector<8x96xf32> to vector<8x32xf32>
    %13 = vector.extract_strided_slice %10 {offsets = [0, 0], sizes = [8, 8], strides = [1, 1]} : vector<8x32xf32> to vector<8x8xf32>
    %14 = vector.extract_strided_slice %11 {offsets = [0, 0], sizes = [8, 8], strides = [1, 1]} : vector<8x32xf32> to vector<8x8xf32>
    %15 = vector.extract_strided_slice %12 {offsets = [0, 0], sizes = [8, 8], strides = [1, 1]} : vector<8x32xf32> to vector<8x8xf32>
    %cst_10 = arith.constant dense<0.000000e+00> : vector<8x8xf32>
    %16 = tpu.matmul %13, %14, %cst_10 {dimension_numbers = #tpu.dot_dimension_numbers<[1], [1], [0], [0], [0, 0, 1, 0], [], []>} : vector<8x8xf32>, vector<8x8xf32>, vector<8x8xf32> -> vector<8x8xf32>
    %cst_11 = arith.constant 0.353553385 : f32
    %17 = vector.broadcast %cst_11 : f32 to vector<8x8xf32>
    %18 = arith.mulf %16, %17 : vector<8x8xf32>
    %cst_12 = arith.constant dense<0xFF800000> : vector<8xf32>
    %19 = vector.multi_reduction <maximumf>, %18, %cst_12 [1] : vector<8x8xf32> to vector<8xf32>
    %20 = vector.shape_cast %19 : vector<8xf32> to vector<8x1xf32>
    %21 = vector.broadcast %20 : vector<8x1xf32> to vector<8x8xf32>
    %22 = arith.subf %18, %21 : vector<8x8xf32>
    %23 = math.exp %22 : vector<8x8xf32>
    %cst_13 = arith.constant dense<0.000000e+00> : vector<8xf32>
    %24 = vector.multi_reduction <add>, %23, %cst_13 [1] : vector<8x8xf32> to vector<8xf32>
    %25 = vector.shape_cast %24 : vector<8xf32> to vector<8x1xf32>
    %26 = tpu.reciprocal %25 {approx = true} : vector<8x1xf32> -> vector<8x1xf32>
    %27 = vector.broadcast %26 : vector<8x1xf32> to vector<8x8xf32>
    %28 = arith.mulf %23, %27 : vector<8x8xf32>
    %cst_14 = arith.constant dense<0.000000e+00> : vector<8x8xf32>
    %29 = tpu.matmul %28, %15, %cst_14 {dimension_numbers = #tpu.dot_dimension_numbers<[1], [0], [0], [1], [0, 0, 1, 1], [], []>} : vector<8x8xf32>, vector<8x8xf32>, vector<8x8xf32> -> vector<8x8xf32>
    %30 = vector.extract_strided_slice %10 {offsets = [0, 8], sizes = [8, 8], strides = [1, 1]} : vector<8x32xf32> to vector<8x8xf32>
    %31 = vector.extract_strided_slice %11 {offsets = [0, 8], sizes = [8, 8], strides = [1, 1]} : vector<8x32xf32> to vector<8x8xf32>
    %32 = vector.extract_strided_slice %12 {offsets = [0, 8], sizes = [8, 8], strides = [1, 1]} : vector<8x32xf32> to vector<8x8xf32>
    %cst_15 = arith.constant dense<0.000000e+00> : vector<8x8xf32>
    %33 = tpu.matmul %30, %31, %cst_15 {dimension_numbers = #tpu.dot_dimension_numbers<[1], [1], [0], [0], [0, 0, 1, 0], [], []>} : vector<8x8xf32>, vector<8x8xf32>, vector<8x8xf32> -> vector<8x8xf32>
    %cst_16 = arith.constant 0.353553385 : f32
    %34 = vector.broadcast %cst_16 : f32 to vector<8x8xf32>
    %35 = arith.mulf %33, %34 : vector<8x8xf32>
    %cst_17 = arith.constant dense<0xFF800000> : vector<8xf32>
    %36 = vector.multi_reduction <maximumf>, %35, %cst_17 [1] : vector<8x8xf32> to vector<8xf32>
    %37 = vector.shape_cast %36 : vector<8xf32> to vector<8x1xf32>
    %38 = vector.broadcast %37 : vector<8x1xf32> to vector<8x8xf32>
    %39 = arith.subf %35, %38 : vector<8x8xf32>
    %40 = math.exp %39 : vector<8x8xf32>
    %cst_18 = arith.constant dense<0.000000e+00> : vector<8xf32>
    %41 = vector.multi_reduction <add>, %40, %cst_18 [1] : vector<8x8xf32> to vector<8xf32>
    %42 = vector.shape_cast %41 : vector<8xf32> to vector<8x1xf32>
    %43 = tpu.reciprocal %42 {approx = true} : vector<8x1xf32> -> vector<8x1xf32>
    %44 = vector.broadcast %43 : vector<8x1xf32> to vector<8x8xf32>
    %45 = arith.mulf %40, %44 : vector<8x8xf32>
    %cst_19 = arith.constant dense<0.000000e+00> : vector<8x8xf32>
    %46 = tpu.matmul %45, %32, %cst_19 {dimension_numbers = #tpu.dot_dimension_numbers<[1], [0], [0], [1], [0, 0, 1, 1], [], []>} : vector<8x8xf32>, vector<8x8xf32>, vector<8x8xf32> -> vector<8x8xf32>
    %47 = vector.extract_strided_slice %10 {offsets = [0, 16], sizes = [8, 8], strides = [1, 1]} : vector<8x32xf32> to vector<8x8xf32>
    %48 = vector.extract_strided_slice %11 {offsets = [0, 16], sizes = [8, 8], strides = [1, 1]} : vector<8x32xf32> to vector<8x8xf32>
    %49 = vector.extract_strided_slice %12 {offsets = [0, 16], sizes = [8, 8], strides = [1, 1]} : vector<8x32xf32> to vector<8x8xf32>
    %cst_20 = arith.constant dense<0.000000e+00> : vector<8x8xf32>
    %50 = tpu.matmul %47, %48, %cst_20 {dimension_numbers = #tpu.dot_dimension_numbers<[1], [1], [0], [0], [0, 0, 1, 0], [], []>} : vector<8x8xf32>, vector<8x8xf32>, vector<8x8xf32> -> vector<8x8xf32>
    %cst_21 = arith.constant 0.353553385 : f32
    %51 = vector.broadcast %cst_21 : f32 to vector<8x8xf32>
    %52 = arith.mulf %50, %51 : vector<8x8xf32>
    %cst_22 = arith.constant dense<0xFF800000> : vector<8xf32>
    %53 = vector.multi_reduction <maximumf>, %52, %cst_22 [1] : vector<8x8xf32> to vector<8xf32>
    %54 = vector.shape_cast %53 : vector<8xf32> to vector<8x1xf32>
    %55 = vector.broadcast %54 : vector<8x1xf32> to vector<8x8xf32>
    %56 = arith.subf %52, %55 : vector<8x8xf32>
    %57 = math.exp %56 : vector<8x8xf32>
    %cst_23 = arith.constant dense<0.000000e+00> : vector<8xf32>
    %58 = vector.multi_reduction <add>, %57, %cst_23 [1] : vector<8x8xf32> to vector<8xf32>
    %59 = vector.shape_cast %58 : vector<8xf32> to vector<8x1xf32>
    %60 = tpu.reciprocal %59 {approx = true} : vector<8x1xf32> -> vector<8x1xf32>
    %61 = vector.broadcast %60 : vector<8x1xf32> to vector<8x8xf32>
    %62 = arith.mulf %57, %61 : vector<8x8xf32>
    %cst_24 = arith.constant dense<0.000000e+00> : vector<8x8xf32>
    %63 = tpu.matmul %62, %49, %cst_24 {dimension_numbers = #tpu.dot_dimension_numbers<[1], [0], [0], [1], [0, 0, 1, 1], [], []>} : vector<8x8xf32>, vector<8x8xf32>, vector<8x8xf32> -> vector<8x8xf32>
    %64 = vector.extract_strided_slice %10 {offsets = [0, 24], sizes = [8, 8], strides = [1, 1]} : vector<8x32xf32> to vector<8x8xf32>
    %65 = vector.extract_strided_slice %11 {offsets = [0, 24], sizes = [8, 8], strides = [1, 1]} : vector<8x32xf32> to vector<8x8xf32>
    %66 = vector.extract_strided_slice %12 {offsets = [0, 24], sizes = [8, 8], strides = [1, 1]} : vector<8x32xf32> to vector<8x8xf32>
    %cst_25 = arith.constant dense<0.000000e+00> : vector<8x8xf32>
    %67 = tpu.matmul %64, %65, %cst_25 {dimension_numbers = #tpu.dot_dimension_numbers<[1], [1], [0], [0], [0, 0, 1, 0], [], []>} : vector<8x8xf32>, vector<8x8xf32>, vector<8x8xf32> -> vector<8x8xf32>
    %cst_26 = arith.constant 0.353553385 : f32
    %68 = vector.broadcast %cst_26 : f32 to vector<8x8xf32>
    %69 = arith.mulf %67, %68 : vector<8x8xf32>
    %cst_27 = arith.constant dense<0xFF800000> : vector<8xf32>
    %70 = vector.multi_reduction <maximumf>, %69, %cst_27 [1] : vector<8x8xf32> to vector<8xf32>
    %71 = vector.shape_cast %70 : vector<8xf32> to vector<8x1xf32>
    %72 = vector.broadcast %71 : vector<8x1xf32> to vector<8x8xf32>
    %73 = arith.subf %69, %72 : vector<8x8xf32>
    %74 = math.exp %73 : vector<8x8xf32>
    %cst_28 = arith.constant dense<0.000000e+00> : vector<8xf32>
    %75 = vector.multi_reduction <add>, %74, %cst_28 [1] : vector<8x8xf32> to vector<8xf32>
    %76 = vector.shape_cast %75 : vector<8xf32> to vector<8x1xf32>
    %77 = tpu.reciprocal %76 {approx = true} : vector<8x1xf32> -> vector<8x1xf32>
    %78 = vector.broadcast %77 : vector<8x1xf32> to vector<8x8xf32>
    %79 = arith.mulf %74, %78 : vector<8x8xf32>
    %cst_29 = arith.constant dense<0.000000e+00> : vector<8x8xf32>
    %80 = tpu.matmul %79, %66, %cst_29 {dimension_numbers = #tpu.dot_dimension_numbers<[1], [0], [0], [1], [0, 0, 1, 1], [], []>} : vector<8x8xf32>, vector<8x8xf32>, vector<8x8xf32> -> vector<8x8xf32>
    %81 = tpu.concatenate %29, %46, %63, %80 in 1 : vector<8x8xf32>, vector<8x8xf32>, vector<8x8xf32>, vector<8x8xf32> -> vector<8x32xf32>
    %c0_30 = arith.constant 0 : index
    %c0_31 = arith.constant 0 : index
    %82 = vector.load %arg5[%c0_30, %c0_31] : memref<32x32xf32, #tpu.memory_space<vmem>>, vector<32x32xf32>
    %cst_32 = arith.constant dense<0.000000e+00> : vector<8x32xf32>
    %83 = tpu.matmul %81, %82, %cst_32 {dimension_numbers = #tpu.dot_dimension_numbers<[1], [0], [0], [1], [0, 0, 1, 1], [], []>} : vector<8x32xf32>, vector<32x32xf32>, vector<8x32xf32> -> vector<8x32xf32>
    %c0_33 = arith.constant 0 : index
    %c0_34 = arith.constant 0 : index
    %84 = vector.load %arg6[%c0_33, %c0_34] : memref<1x32xf32, #tpu.memory_space<vmem>>, vector<1x32xf32>
    %85 = vector.broadcast %84 : vector<1x32xf32> to vector<8x32xf32>
    %86 = arith.addf %83, %85 : vector<8x32xf32>
    %87 = vector.broadcast %0 : f32 to vector<8x32xf32>
    %88 = arith.mulf %87, %86 : vector<8x32xf32>
    %89 = arith.addf %2, %88 : vector<8x32xf32>
    %c0_35 = arith.constant 0 : index
    %c0_36 = arith.constant 0 : index
    %90 = vector.load %arg7[%c0_35, %c0_36] : memref<32x96xf32, #tpu.memory_space<vmem>>, vector<32x96xf32>
    %c0_37 = arith.constant 0 : index
    %c0_38 = arith.constant 0 : index
    %91 = vector.load %arg8[%c0_37, %c0_38] : memref<1x96xf32, #tpu.memory_space<vmem>>, vector<1x96xf32>
    %92 = vector.extract_strided_slice %90 {offsets = [0, 0], sizes = [32, 32], strides = [1, 1]} : vector<32x96xf32> to vector<32x32xf32>
    %cst_39 = arith.constant dense<0.000000e+00> : vector<8x32xf32>
    %93 = tpu.matmul %89, %92, %cst_39 {dimension_numbers = #tpu.dot_dimension_numbers<[1], [0], [0], [1], [0, 0, 1, 1], [], []>} : vector<8x32xf32>, vector<32x32xf32>, vector<8x32xf32> -> vector<8x32xf32>
    %94 = vector.extract_strided_slice %91 {offsets = [0, 0], sizes = [1, 32], strides = [1, 1]} : vector<1x96xf32> to vector<1x32xf32>
    %95 = vector.broadcast %94 : vector<1x32xf32> to vector<8x32xf32>
    %96 = arith.addf %93, %95 : vector<8x32xf32>
    %97 = vector.extract_strided_slice %90 {offsets = [0, 32], sizes = [32, 64], strides = [1, 1]} : vector<32x96xf32> to vector<32x64xf32>
    %cst_40 = arith.constant dense<0.000000e+00> : vector<16x64xf32>
    %98 = tpu.matmul %4, %97, %cst_40 {dimension_numbers = #tpu.dot_dimension_numbers<[1], [0], [0], [1], [0, 0, 1, 1], [], []>} : vector<16x32xf32>, vector<32x64xf32>, vector<16x64xf32> -> vector<16x64xf32>
    %99 = vector.extract_strided_slice %91 {offsets = [0, 32], sizes = [1, 64], strides = [1, 1]} : vector<1x96xf32> to vector<1x64xf32>
    %100 = vector.broadcast %99 : vector<1x64xf32> to vector<16x64xf32>
    %101 = arith.addf %98, %100 : vector<16x64xf32>
    %102 = vector.extract_strided_slice %101 {offsets = [0, 0], sizes = [16, 32], strides = [1, 1]} : vector<16x64xf32> to vector<16x32xf32>
    %103 = vector.extract_strided_slice %101 {offsets = [0, 32], sizes = [16, 32], strides = [1, 1]} : vector<16x64xf32> to vector<16x32xf32>
    %104 = vector.extract_strided_slice %96 {offsets = [0, 0], sizes = [8, 8], strides = [1, 1]} : vector<8x32xf32> to vector<8x8xf32>
    %105 = vector.extract_strided_slice %102 {offsets = [0, 0], sizes = [16, 8], strides = [1, 1]} : vector<16x32xf32> to vector<16x8xf32>
    %106 = vector.extract_strided_slice %103 {offsets = [0, 0], sizes = [16, 8], strides = [1, 1]} : vector<16x32xf32> to vector<16x8xf32>
    %cst_41 = arith.constant dense<0.000000e+00> : vector<8x16xf32>
    %107 = tpu.matmul %104, %105, %cst_41 {dimension_numbers = #tpu.dot_dimension_numbers<[1], [1], [0], [0], [0, 0, 1, 0], [], []>} : vector<8x8xf32>, vector<16x8xf32>, vector<8x16xf32> -> vector<8x16xf32>
    %cst_42 = arith.constant 0.353553385 : f32
    %108 = vector.broadcast %cst_42 : f32 to vector<8x16xf32>
    %109 = arith.mulf %107, %108 : vector<8x16xf32>
    %cst_43 = arith.constant dense<0xFF800000> : vector<8xf32>
    %110 = vector.multi_reduction <maximumf>, %109, %cst_43 [1] : vector<8x16xf32> to vector<8xf32>
    %111 = vector.shape_cast %110 : vector<8xf32> to vector<8x1xf32>
    %112 = vector.broadcast %111 : vector<8x1xf32> to vector<8x16xf32>
    %113 = arith.subf %109, %112 : vector<8x16xf32>
    %114 = math.exp %113 : vector<8x16xf32>
    %cst_44 = arith.constant dense<0.000000e+00> : vector<8xf32>
    %115 = vector.multi_reduction <add>, %114, %cst_44 [1] : vector<8x16xf32> to vector<8xf32>
    %116 = vector.shape_cast %115 : vector<8xf32> to vector<8x1xf32>
    %117 = tpu.reciprocal %116 {approx = true} : vector<8x1xf32> -> vector<8x1xf32>
    %118 = vector.broadcast %117 : vector<8x1xf32> to vector<8x16xf32>
    %119 = arith.mulf %114, %118 : vector<8x16xf32>
    %cst_45 = arith.constant dense<0.000000e+00> : vector<8x8xf32>
    %120 = tpu.matmul %119, %106, %cst_45 {dimension_numbers = #tpu.dot_dimension_numbers<[1], [0], [0], [1], [0, 0, 1, 1], [], []>} : vector<8x16xf32>, vector<16x8xf32>, vector<8x8xf32> -> vector<8x8xf32>
    %121 = vector.extract_strided_slice %96 {offsets = [0, 8], sizes = [8, 8], strides = [1, 1]} : vector<8x32xf32> to vector<8x8xf32>
    %122 = vector.extract_strided_slice %102 {offsets = [0, 8], sizes = [16, 8], strides = [1, 1]} : vector<16x32xf32> to vector<16x8xf32>
    %123 = vector.extract_strided_slice %103 {offsets = [0, 8], sizes = [16, 8], strides = [1, 1]} : vector<16x32xf32> to vector<16x8xf32>
    %cst_46 = arith.constant dense<0.000000e+00> : vector<8x16xf32>
    %124 = tpu.matmul %121, %122, %cst_46 {dimension_numbers = #tpu.dot_dimension_numbers<[1], [1], [0], [0], [0, 0, 1, 0], [], []>} : vector<8x8xf32>, vector<16x8xf32>, vector<8x16xf32> -> vector<8x16xf32>
    %cst_47 = arith.constant 0.353553385 : f32
    %125 = vector.broadcast %cst_47 : f32 to vector<8x16xf32>
    %126 = arith.mulf %124, %125 : vector<8x16xf32>
    %cst_48 = arith.constant dense<0xFF800000> : vector<8xf32>
    %127 = vector.multi_reduction <maximumf>, %126, %cst_48 [1] : vector<8x16xf32> to vector<8xf32>
    %128 = vector.shape_cast %127 : vector<8xf32> to vector<8x1xf32>
    %129 = vector.broadcast %128 : vector<8x1xf32> to vector<8x16xf32>
    %130 = arith.subf %126, %129 : vector<8x16xf32>
    %131 = math.exp %130 : vector<8x16xf32>
    %cst_49 = arith.constant dense<0.000000e+00> : vector<8xf32>
    %132 = vector.multi_reduction <add>, %131, %cst_49 [1] : vector<8x16xf32> to vector<8xf32>
    %133 = vector.shape_cast %132 : vector<8xf32> to vector<8x1xf32>
    %134 = tpu.reciprocal %133 {approx = true} : vector<8x1xf32> -> vector<8x1xf32>
    %135 = vector.broadcast %134 : vector<8x1xf32> to vector<8x16xf32>
    %136 = arith.mulf %131, %135 : vector<8x16xf32>
    %cst_50 = arith.constant dense<0.000000e+00> : vector<8x8xf32>
    %137 = tpu.matmul %136, %123, %cst_50 {dimension_numbers = #tpu.dot_dimension_numbers<[1], [0], [0], [1], [0, 0, 1, 1], [], []>} : vector<8x16xf32>, vector<16x8xf32>, vector<8x8xf32> -> vector<8x8xf32>
    %138 = vector.extract_strided_slice %96 {offsets = [0, 16], sizes = [8, 8], strides = [1, 1]} : vector<8x32xf32> to vector<8x8xf32>
    %139 = vector.extract_strided_slice %102 {offsets = [0, 16], sizes = [16, 8], strides = [1, 1]} : vector<16x32xf32> to vector<16x8xf32>
    %140 = vector.extract_strided_slice %103 {offsets = [0, 16], sizes = [16, 8], strides = [1, 1]} : vector<16x32xf32> to vector<16x8xf32>
    %cst_51 = arith.constant dense<0.000000e+00> : vector<8x16xf32>
    %141 = tpu.matmul %138, %139, %cst_51 {dimension_numbers = #tpu.dot_dimension_numbers<[1], [1], [0], [0], [0, 0, 1, 0], [], []>} : vector<8x8xf32>, vector<16x8xf32>, vector<8x16xf32> -> vector<8x16xf32>
    %cst_52 = arith.constant 0.353553385 : f32
    %142 = vector.broadcast %cst_52 : f32 to vector<8x16xf32>
    %143 = arith.mulf %141, %142 : vector<8x16xf32>
    %cst_53 = arith.constant dense<0xFF800000> : vector<8xf32>
    %144 = vector.multi_reduction <maximumf>, %143, %cst_53 [1] : vector<8x16xf32> to vector<8xf32>
    %145 = vector.shape_cast %144 : vector<8xf32> to vector<8x1xf32>
    %146 = vector.broadcast %145 : vector<8x1xf32> to vector<8x16xf32>
    %147 = arith.subf %143, %146 : vector<8x16xf32>
    %148 = math.exp %147 : vector<8x16xf32>
    %cst_54 = arith.constant dense<0.000000e+00> : vector<8xf32>
    %149 = vector.multi_reduction <add>, %148, %cst_54 [1] : vector<8x16xf32> to vector<8xf32>
    %150 = vector.shape_cast %149 : vector<8xf32> to vector<8x1xf32>
    %151 = tpu.reciprocal %150 {approx = true} : vector<8x1xf32> -> vector<8x1xf32>
    %152 = vector.broadcast %151 : vector<8x1xf32> to vector<8x16xf32>
    %153 = arith.mulf %148, %152 : vector<8x16xf32>
    %cst_55 = arith.constant dense<0.000000e+00> : vector<8x8xf32>
    %154 = tpu.matmul %153, %140, %cst_55 {dimension_numbers = #tpu.dot_dimension_numbers<[1], [0], [0], [1], [0, 0, 1, 1], [], []>} : vector<8x16xf32>, vector<16x8xf32>, vector<8x8xf32> -> vector<8x8xf32>
    %155 = vector.extract_strided_slice %96 {offsets = [0, 24], sizes = [8, 8], strides = [1, 1]} : vector<8x32xf32> to vector<8x8xf32>
    %156 = vector.extract_strided_slice %102 {offsets = [0, 24], sizes = [16, 8], strides = [1, 1]} : vector<16x32xf32> to vector<16x8xf32>
    %157 = vector.extract_strided_slice %103 {offsets = [0, 24], sizes = [16, 8], strides = [1, 1]} : vector<16x32xf32> to vector<16x8xf32>
    %cst_56 = arith.constant dense<0.000000e+00> : vector<8x16xf32>
    %158 = tpu.matmul %155, %156, %cst_56 {dimension_numbers = #tpu.dot_dimension_numbers<[1], [1], [0], [0], [0, 0, 1, 0], [], []>} : vector<8x8xf32>, vector<16x8xf32>, vector<8x16xf32> -> vector<8x16xf32>
    %cst_57 = arith.constant 0.353553385 : f32
    %159 = vector.broadcast %cst_57 : f32 to vector<8x16xf32>
    %160 = arith.mulf %158, %159 : vector<8x16xf32>
    %cst_58 = arith.constant dense<0xFF800000> : vector<8xf32>
    %161 = vector.multi_reduction <maximumf>, %160, %cst_58 [1] : vector<8x16xf32> to vector<8xf32>
    %162 = vector.shape_cast %161 : vector<8xf32> to vector<8x1xf32>
    %163 = vector.broadcast %162 : vector<8x1xf32> to vector<8x16xf32>
    %164 = arith.subf %160, %163 : vector<8x16xf32>
    %165 = math.exp %164 : vector<8x16xf32>
    %cst_59 = arith.constant dense<0.000000e+00> : vector<8xf32>
    %166 = vector.multi_reduction <add>, %165, %cst_59 [1] : vector<8x16xf32> to vector<8xf32>
    %167 = vector.shape_cast %166 : vector<8xf32> to vector<8x1xf32>
    %168 = tpu.reciprocal %167 {approx = true} : vector<8x1xf32> -> vector<8x1xf32>
    %169 = vector.broadcast %168 : vector<8x1xf32> to vector<8x16xf32>
    %170 = arith.mulf %165, %169 : vector<8x16xf32>
    %cst_60 = arith.constant dense<0.000000e+00> : vector<8x8xf32>
    %171 = tpu.matmul %170, %157, %cst_60 {dimension_numbers = #tpu.dot_dimension_numbers<[1], [0], [0], [1], [0, 0, 1, 1], [], []>} : vector<8x16xf32>, vector<16x8xf32>, vector<8x8xf32> -> vector<8x8xf32>
    %172 = tpu.concatenate %120, %137, %154, %171 in 1 : vector<8x8xf32>, vector<8x8xf32>, vector<8x8xf32>, vector<8x8xf32> -> vector<8x32xf32>
    %c0_61 = arith.constant 0 : index
    %c0_62 = arith.constant 0 : index
    %173 = vector.load %arg9[%c0_61, %c0_62] : memref<32x32xf32, #tpu.memory_space<vmem>>, vector<32x32xf32>
    %cst_63 = arith.constant dense<0.000000e+00> : vector<8x32xf32>
    %174 = tpu.matmul %172, %173, %cst_63 {dimension_numbers = #tpu.dot_dimension_numbers<[1], [0], [0], [1], [0, 0, 1, 1], [], []>} : vector<8x32xf32>, vector<32x32xf32>, vector<8x32xf32> -> vector<8x32xf32>
    %c0_64 = arith.constant 0 : index
    %c0_65 = arith.constant 0 : index
    %175 = vector.load %arg10[%c0_64, %c0_65] : memref<1x32xf32, #tpu.memory_space<vmem>>, vector<1x32xf32>
    %176 = vector.broadcast %175 : vector<1x32xf32> to vector<8x32xf32>
    %177 = arith.addf %174, %176 : vector<8x32xf32>
    %178 = vector.broadcast %0 : f32 to vector<8x32xf32>
    %179 = arith.mulf %178, %177 : vector<8x32xf32>
    %180 = arith.addf %89, %179 : vector<8x32xf32>
    %c0_66 = arith.constant 0 : index
    %c0_67 = arith.constant 0 : index
    %181 = vector.load %arg11[%c0_66, %c0_67] : memref<32x64xf32, #tpu.memory_space<vmem>>, vector<32x64xf32>
    %cst_68 = arith.constant dense<0.000000e+00> : vector<8x64xf32>
    %182 = tpu.matmul %180, %181, %cst_68 {dimension_numbers = #tpu.dot_dimension_numbers<[1], [0], [0], [1], [0, 0, 1, 1], [], []>} : vector<8x32xf32>, vector<32x64xf32>, vector<8x64xf32> -> vector<8x64xf32>
    %c0_69 = arith.constant 0 : index
    %c0_70 = arith.constant 0 : index
    %183 = vector.load %arg12[%c0_69, %c0_70] : memref<1x64xf32, #tpu.memory_space<vmem>>, vector<1x64xf32>
    %184 = vector.broadcast %183 : vector<1x64xf32> to vector<8x64xf32>
    %185 = arith.addf %182, %184 : vector<8x64xf32>
    %cst_71 = arith.constant 0.000000e+00 : f32
    %186 = vector.broadcast %cst_71 : f32 to vector<8x64xf32>
    %187 = arith.maximumf %185, %186 : vector<8x64xf32>
    %c0_72 = arith.constant 0 : index
    %c0_73 = arith.constant 0 : index
    %188 = vector.load %arg13[%c0_72, %c0_73] : memref<64x32xf32, #tpu.memory_space<vmem>>, vector<64x32xf32>
    %cst_74 = arith.constant dense<0.000000e+00> : vector<8x32xf32>
    %189 = tpu.matmul %187, %188, %cst_74 {dimension_numbers = #tpu.dot_dimension_numbers<[1], [0], [0], [1], [0, 0, 1, 1], [], []>} : vector<8x64xf32>, vector<64x32xf32>, vector<8x32xf32> -> vector<8x32xf32>
    %c0_75 = arith.constant 0 : index
    %c0_76 = arith.constant 0 : index
    %190 = vector.load %arg14[%c0_75, %c0_76] : memref<1x32xf32, #tpu.memory_space<vmem>>, vector<1x32xf32>
    %191 = vector.broadcast %190 : vector<1x32xf32> to vector<8x32xf32>
    %192 = arith.addf %189, %191 : vector<8x32xf32>
    %193 = vector.broadcast %0 : f32 to vector<8x32xf32>
    %194 = arith.mulf %193, %192 : vector<8x32xf32>
    %195 = arith.addf %180, %194 : vector<8x32xf32>
    %c0_77 = arith.constant 0 : index
    %c0_78 = arith.constant 0 : index
    %c0_79 = arith.constant 0 : index
    %196 = vector.load %arg16[%c0_77, %c0_78, %c0_79] : memref<1x8x32xf32, #tpu.memory_space<vmem>>, vector<1x8x32xf32>
    %197 = vector.shape_cast %196 : vector<1x8x32xf32> to vector<8x32xf32>
    %198 = vector.shape_cast %195 : vector<8x32xf32> to vector<1x8x32xf32>
    tpu.vector_store %arg16[%c0_77, %c0_78, %c0_79], %198 {strides = array<i32>} : memref<1x8x32xf32, #tpu.memory_space<vmem>>, vector<1x8x32xf32>,
    return
  }
  func.func @transform_0(%arg0: i32) -> (i32, i32, i32) {
    %c0_i32 = arith.constant 0 : i32
    %c0_i32_0 = arith.constant 0 : i32
    %c0_i32_1 = arith.constant 0 : i32
    return %arg0, %c0_i32, %c0_i32_0 : i32, i32, i32
  }
  func.func @transform_1(%arg0: i32) -> (i32, i32, i32) {
    %c0_i32 = arith.constant 0 : i32
    %c0_i32_0 = arith.constant 0 : i32
    %c0_i32_1 = arith.constant 0 : i32
    return %arg0, %c0_i32, %c0_i32_0 : i32, i32, i32
  }
  func.func @transform_2(%arg0: i32) -> (i32, i32) {
    %c0_i32 = arith.constant 0 : i32
    %c0_i32_0 = arith.constant 0 : i32
    %c0_i32_1 = arith.constant 0 : i32
    return %c0_i32, %c0_i32_0 : i32, i32
  }
  func.func @transform_3(%arg0: i32) -> (i32, i32) {
    %c0_i32 = arith.constant 0 : i32
    %c0_i32_0 = arith.constant 0 : i32
    %c0_i32_1 = arith.constant 0 : i32
    return %c0_i32, %c0_i32_0 : i32, i32
  }
  func.func @transform_4(%arg0: i32) -> (i32, i32) {
    %c0_i32 = arith.constant 0 : i32
    %c0_i32_0 = arith.constant 0 : i32
    %c0_i32_1 = arith.constant 0 : i32
    return %c0_i32, %c0_i32_0 : i32, i32
  }
  func.func @transform_5(%arg0: i32) -> (i32, i32) {
    %c0_i32 = arith.constant 0 : i32
    %c0_i32_0 = arith.constant 0 : i32
    %c0_i32_1 = arith.constant 0 : i32
    return %c0_i32, %c0_i32_0 : i32, i32
  }
  func.func @transform_6(%arg0: i32) -> (i32, i32) {
    %c0_i32 = arith.constant 0 : i32
    %c0_i32_0 = arith.constant 0 : i32
    %c0_i32_1 = arith.constant 0 : i32
    return %c0_i32, %c0_i32_0 : i32, i32
  }
  func.func @transform_7(%arg0: i32) -> (i32, i32) {
    %c0_i32 = arith.constant 0 : i32
    %c0_i32_0 = arith.constant 0 : i32
    %c0_i32_1 = arith.constant 0 : i32
    return %c0_i32, %c0_i32_0 : i32, i32
  }
  func.func @transform_8(%arg0: i32) -> (i32, i32) {
    %c0_i32 = arith.constant 0 : i32
    %c0_i32_0 = arith.constant 0 : i32
    %c0_i32_1 = arith.constant 0 : i32
    return %c0_i32, %c0_i32_0 : i32, i32
  }
  func.func @transform_9(%arg0: i32) -> (i32, i32) {
    %c0_i32 = arith.constant 0 : i32
    %c0_i32_0 = arith.constant 0 : i32
    %c0_i32_1 = arith.constant 0 : i32
    return %c0_i32, %c0_i32_0 : i32, i32
  }
  func.func @transform_10(%arg0: i32) -> (i32, i32) {
    %c0_i32 = arith.constant 0 : i32
    %c0_i32_0 = arith.constant 0 : i32
    %c0_i32_1 = arith.constant 0 : i32
    return %c0_i32, %c0_i32_0 : i32, i32
  }
  func.func @transform_11(%arg0: i32) -> (i32, i32) {
    %c0_i32 = arith.constant 0 : i32
    %c0_i32_0 = arith.constant 0 : i32
    %c0_i32_1 = arith.constant 0 : i32
    return %c0_i32, %c0_i32_0 : i32, i32
  }
  func.func @transform_12(%arg0: i32) -> (i32, i32) {
    %c0_i32 = arith.constant 0 : i32
    %c0_i32_0 = arith.constant 0 : i32
    %c0_i32_1 = arith.constant 0 : i32
    return %c0_i32, %c0_i32_0 : i32, i32
  }
  func.func @transform_13(%arg0: i32) -> (i32, i32) {
    %c0_i32 = arith.constant 0 : i32
    %c0_i32_0 = arith.constant 0 : i32
    %c0_i32_1 = arith.constant 0 : i32
    return %c0_i32, %c0_i32_0 : i32, i32
  }
  func.func @transform_14(%arg0: i32) -> i32 {
    %c0_i32 = arith.constant 0 : i32
    %c0_i32_0 = arith.constant 0 : i32
    return %c0_i32 : i32
  }
  func.func @transform_15(%arg0: i32) -> (i32, i32, i32) {
    %c0_i32 = arith.constant 0 : i32
    %c0_i32_0 = arith.constant 0 : i32
    %c0_i32_1 = arith.constant 0 : i32
    return %arg0, %c0_i32, %c0_i32_0 : i32, i32, i32
  }
}

</mosaic_0001>

<llo_original>
// kernel: rztx_decoder_layer.1
$region0: #{rztx_decoder_layer.1}
  #allocation0 [shape = 'u32[]', space=smem, size = 0x4, offset = 0x4, fixed_abs, tag = 'smem constant byte address 0x4 - core index']
  #allocation1 [shape = 'u32[144,128]{1,0:T(1,128)}', space=vmem, size = 0x12000, scoped, tag = 'internal scratch']
  #allocation2 [shape = 'f32[1]{0:T(128)S(6)}', space=smem, size = 0x200, scoped, tag = 'scoped memory for rztx_decoder_layer.1']
  %s0 = inlined_call_operand.vmem [shape: f32[2,8,32], index: 0, kind: input, shape index: {}]
  %s1 = inlined_call_operand.vmem [shape: f32[2,16,32], index: 1, kind: input, shape index: {}]
  %s2 = inlined_call_operand.vmem [shape: f32[32,96], index: 2, kind: input, shape index: {}]
  %s3 = inlined_call_operand.vmem [shape: f32[1,96], index: 3, kind: input, shape index: {}]
  %s4 = inlined_call_operand.vmem [shape: f32[32,32], index: 4, kind: input, shape index: {}]
  %s5 = inlined_call_operand.vmem [shape: f32[1,32], index: 5, kind: input, shape index: {}]
  %s6 = inlined_call_operand.vmem [shape: f32[32,96], index: 6, kind: input, shape index: {}]
  %s7 = inlined_call_operand.vmem [shape: f32[1,96], index: 7, kind: input, shape index: {}]
  %s8 = inlined_call_operand.vmem [shape: f32[32,32], index: 8, kind: input, shape index: {}]
  %s9 = inlined_call_operand.vmem [shape: f32[1,32], index: 9, kind: input, shape index: {}]
  %s10 = inlined_call_operand.vmem [shape: f32[32,64], index: 10, kind: input, shape index: {}]
  %s11 = inlined_call_operand.vmem [shape: f32[1,64], index: 11, kind: input, shape index: {}]
  %s12 = inlined_call_operand.vmem [shape: f32[64,32], index: 12, kind: input, shape index: {}]
  %s13 = inlined_call_operand.vmem [shape: f32[1,32], index: 13, kind: input, shape index: {}]
  %s14 = inlined_call_operand.<no memory space> [shape: f32[1], index: 14, kind: input, shape index: {}]
  %s15 = inlined_call_operand.vmem [shape: f32[2,8,32], index: 15, kind: output, shape index: {}]
  %s16 = sld [smem:[#allocation0]]
  $region93: #{rztx_decoder_layer.1} parent=0
    _
  %s18 = ssub.s32 1, %s16
  %s19 = scalar_select 0, %s18, %s16
  %20 = sst [smem:[#allocation2]] %s14
  loop: start=0, step=1, limit=4
  $region2: #{rztx_decoder_layer.1} parent=0 // loop_pre_header
    _
  $region3: #{rztx_decoder_layer.1} parent=0 // loop_header
    %s22 = sphi 0, %s26
    %p23 = scmp.ge.s32.totalorder %s22, 4
    %s32 = sphi 0, %s34
    %s35 = sphi 0, %s32
    %s36 = sphi 0, %s35
    %s52 = sphi 0, %s36
    %s58 = sphi 0, %s60
    %s61 = sphi 0, %s58
    %s62 = sphi 0, %s61
    %s78 = sphi 0, %s62
    %s82 = sphi 0, %s82
    %s84 = sphi 0, %s82
    %s85 = sphi 0, %s84
    %s99 = sphi 0, %s85
    %s103 = sphi 0, %s103
    %s105 = sphi 0, %s103
    %s106 = sphi 0, %s105
    %s120 = sphi 0, %s106
    %s124 = sphi 0, %s124
    %s126 = sphi 0, %s124
    %s127 = sphi 0, %s126
    %s141 = sphi 0, %s127
    %s145 = sphi 0, %s145
    %s147 = sphi 0, %s145
    %s148 = sphi 0, %s147
    %s162 = sphi 0, %s148
    %s166 = sphi 0, %s166
    %s168 = sphi 0, %s166
    %s169 = sphi 0, %s168
    %s183 = sphi 0, %s169
    %s187 = sphi 0, %s187
    %s189 = sphi 0, %s187
    %s190 = sphi 0, %s189
    %s204 = sphi 0, %s190
    %s208 = sphi 0, %s208
    %s210 = sphi 0, %s208
    %s211 = sphi 0, %s210
    %s225 = sphi 0, %s211
    %s229 = sphi 0, %s229
    %s231 = sphi 0, %s229
    %s232 = sphi 0, %s231
    %s246 = sphi 0, %s232
    %s250 = sphi 0, %s250
    %s252 = sphi 0, %s250
    %s253 = sphi 0, %s252
    %s267 = sphi 0, %s253
    %s271 = sphi 0, %s271
    %s273 = sphi 0, %s271
    %s274 = sphi 0, %s273
    %s288 = sphi 0, %s274
    %s292 = sphi 0, %s292
    %s294 = sphi 0, %s292
    %s295 = sphi 0, %s294
    %s309 = sphi 0, %s295
    %s313 = sphi 0, %s313
    %s315 = sphi 0, %s313
    %s316 = sphi 0, %s315
    %s330 = sphi 0, %s316
    %s334 = sphi 0, %s334
    %s336 = sphi 0, %s334
    %s337 = sphi 0, %s336
    %s351 = sphi 0, %s337
    %s357 = sphi 0, %s359
    %s360 = sphi 0, %s357
    %s361 = sphi 0, %s360
    %s377 = sphi 0, %s361
  $region4: #{rztx_decoder_layer.1} parent=0 // loop_header_branch
    %25 = sbr.rel (%p23) target = $region8
  $region5: #{rztx_decoder_layer.1} parent=0 // loop_body
    %s27 = ssub.s32 %s22, 1
    %s28 = ssub.s32 %s22, 2
    %s29 = sadd.s32 %s22, 1
    %s30 = ssub.s32 %s22, %s29
    %p31 = scmp.eq.s32.totalorder %s30, 0
    %s33 = sadd.s32 %s32, 1
    %s34 = scalar_select %p31, %s32, %s33
    %p37 = pneg %p31
    %p38 = scmp.eq.s32.totalorder %s22, 1
    %p39 = por %p37, %p38
    %p40 = scmp.ne.s32.totalorder %s32, %s35
    %p41 = scmp.eq.s32.totalorder %s22, 0
    %p42 = por %p40, %p41
    %p43 = scmp.ne.s32.totalorder %s32, %s35
    %p44 = scmp.eq.s32.totalorder %s27, 1
    %p45 = por %p43, %p44
    %p46 = scmp.ne.s32.totalorder %s35, %s36
    %p47 = scmp.eq.s32.totalorder %s27, 0
    %p48 = por %p46, %p47
    %p49 = scmp.ne.s32.totalorder %s35, %s36
    %p50 = scmp.eq.s32.totalorder %s28, 1
    %p51 = por %p49, %p50
    %p53 = scmp.ne.s32.totalorder %s36, %s52
    %p54 = scmp.eq.s32.totalorder %s28, 0
    %p55 = por %p53, %p54
    %s56 = ssub.s32 %s22, %s29
    %p57 = scmp.eq.s32.totalorder %s56, 0
    %s59 = sadd.s32 %s58, 1
    %s60 = scalar_select %p57, %s58, %s59
    %p63 = pneg %p57
    %p64 = scmp.eq.s32.totalorder %s22, 1
    %p65 = por %p63, %p64
    %p66 = scmp.ne.s32.totalorder %s58, %s61
    %p67 = scmp.eq.s32.totalorder %s22, 0
    %p68 = por %p66, %p67
    %p69 = scmp.ne.s32.totalorder %s58, %s61
    %p70 = scmp.eq.s32.totalorder %s27, 1
    %p71 = por %p69, %p70
    %p72 = scmp.ne.s32.totalorder %s61, %s62
    %p73 = scmp.eq.s32.totalorder %s27, 0
    %p74 = por %p72, %p73
    %p75 = scmp.ne.s32.totalorder %s61, %s62
    %p76 = scmp.eq.s32.totalorder %s28, 1
    %p77 = por %p75, %p76
    %p79 = scmp.ne.s32.totalorder %s62, %s78
    %p80 = scmp.eq.s32.totalorder %s28, 0
    %p81 = por %p79, %p80
    %s83 = sadd.s32 %s82, 1
    %p86 = scmp.eq.s32.totalorder %s22, 1
    %p87 = scmp.ne.s32.totalorder %s82, %s84
    %p88 = scmp.eq.s32.totalorder %s22, 0
    %p89 = por %p87, %p88
    %p90 = scmp.ne.s32.totalorder %s82, %s84
    %p91 = scmp.eq.s32.totalorder %s27, 1
    %p92 = por %p90, %p91
    %p93 = scmp.ne.s32.totalorder %s84, %s85
    %p94 = scmp.eq.s32.totalorder %s27, 0
    %p95 = por %p93, %p94
    %p96 = scmp.ne.s32.totalorder %s84, %s85
    %p97 = scmp.eq.s32.totalorder %s28, 1
    %p98 = por %p96, %p97
    %p100 = scmp.ne.s32.totalorder %s85, %s99
    %p101 = scmp.eq.s32.totalorder %s28, 0
    %p102 = por %p100, %p101
    %s104 = sadd.s32 %s103, 1
    %p107 = scmp.eq.s32.totalorder %s22, 1
    %p108 = scmp.ne.s32.totalorder %s103, %s105
    %p109 = scmp.eq.s32.totalorder %s22, 0
    %p110 = por %p108, %p109
    %p111 = scmp.ne.s32.totalorder %s103, %s105
    %p112 = scmp.eq.s32.totalorder %s27, 1
    %p113 = por %p111, %p112
    %p114 = scmp.ne.s32.totalorder %s105, %s106
    %p115 = scmp.eq.s32.totalorder %s27, 0
    %p116 = por %p114, %p115
    %p117 = scmp.ne.s32.totalorder %s105, %s106
    %p118 = scmp.eq.s32.totalorder %s28, 1
    %p119 = por %p117, %p118
    %p121 = scmp.ne.s32.totalorder %s106, %s120
    %p122 = scmp.eq.s32.totalorder %s28, 0
    %p123 = por %p121, %p122
    %s125 = sadd.s32 %s124, 1
    %p128 = scmp.eq.s32.totalorder %s22, 1
    %p129 = scmp.ne.s32.totalorder %s124, %s126
    %p130 = scmp.eq.s32.totalorder %s22, 0
    %p131 = por %p129, %p130
    %p132 = scmp.ne.s32.totalorder %s124, %s126
    %p133 = scmp.eq.s32.totalorder %s27, 1
    %p134 = por %p132, %p133
    %p135 = scmp.ne.s32.totalorder %s126, %s127
    %p136 = scmp.eq.s32.totalorder %s27, 0
    %p137 = por %p135, %p136
    %p138 = scmp.ne.s32.totalorder %s126, %s127
    %p139 = scmp.eq.s32.totalorder %s28, 1
    %p140 = por %p138, %p139
    %p142 = scmp.ne.s32.totalorder %s127, %s141
    %p143 = scmp.eq.s32.totalorder %s28, 0
    %p144 = por %p142, %p143
    %s146 = sadd.s32 %s145, 1
    %p149 = scmp.eq.s32.totalorder %s22, 1
    %p150 = scmp.ne.s32.totalorder %s145, %s147
    %p151 = scmp.eq.s32.totalorder %s22, 0
    %p152 = por %p150, %p151
    %p153 = scmp.ne.s32.totalorder %s145, %s147
    %p154 = scmp.eq.s32.totalorder %s27, 1
    %p155 = por %p153, %p154
    %p156 = scmp.ne.s32.totalorder %s147, %s148
    %p157 = scmp.eq.s32.totalorder %s27, 0
    %p158 = por %p156, %p157
    %p159 = scmp.ne.s32.totalorder %s147, %s148
    %p160 = scmp.eq.s32.totalorder %s28, 1
    %p161 = por %p159, %p160
    %p163 = scmp.ne.s32.totalorder %s148, %s162
    %p164 = scmp.eq.s32.totalorder %s28, 0
    %p165 = por %p163, %p164
    %s167 = sadd.s32 %s166, 1
    %p170 = scmp.eq.s32.totalorder %s22, 1
    %p171 = scmp.ne.s32.totalorder %s166, %s168
    %p172 = scmp.eq.s32.totalorder %s22, 0
    %p173 = por %p171, %p172
    %p174 = scmp.ne.s32.totalorder %s166, %s168
    %p175 = scmp.eq.s32.totalorder %s27, 1
    %p176 = por %p174, %p175
    %p177 = scmp.ne.s32.totalorder %s168, %s169
    %p178 = scmp.eq.s32.totalorder %s27, 0
    %p179 = por %p177, %p178
    %p180 = scmp.ne.s32.totalorder %s168, %s169
    %p181 = scmp.eq.s32.totalorder %s28, 1
    %p182 = por %p180, %p181
    %p184 = scmp.ne.s32.totalorder %s169, %s183
    %p185 = scmp.eq.s32.totalorder %s28, 0
    %p186 = por %p184, %p185
    %s188 = sadd.s32 %s187, 1
    %p191 = scmp.eq.s32.totalorder %s22, 1
    %p192 = scmp.ne.s32.totalorder %s187, %s189
    %p193 = scmp.eq.s32.totalorder %s22, 0
    %p194 = por %p192, %p193
    %p195 = scmp.ne.s32.totalorder %s187, %s189
    %p196 = scmp.eq.s32.totalorder %s27, 1
    %p197 = por %p195, %p196
    %p198 = scmp.ne.s32.totalorder %s189, %s190
    %p199 = scmp.eq.s32.totalorder %s27, 0
    %p200 = por %p198, %p199
    %p201 = scmp.ne.s32.totalorder %s189, %s190
    %p202 = scmp.eq.s32.totalorder %s28, 1
    %p203 = por %p201, %p202
    %p205 = scmp.ne.s32.totalorder %s190, %s204
    %p206 = scmp.eq.s32.totalorder %s28, 0
    %p207 = por %p205, %p206
    %s209 = sadd.s32 %s208, 1
    %p212 = scmp.eq.s32.totalorder %s22, 1
    %p213 = scmp.ne.s32.totalorder %s208, %s210
    %p214 = scmp.eq.s32.totalorder %s22, 0
    %p215 = por %p213, %p214
    %p216 = scmp.ne.s32.totalorder %s208, %s210
    %p217 = scmp.eq.s32.totalorder %s27, 1
    %p218 = por %p216, %p217
    %p219 = scmp.ne.s32.totalorder %s210, %s211
    %p220 = scmp.eq.s32.totalorder %s27, 0
    %p221 = por %p219, %p220
    %p222 = scmp.ne.s32.totalorder %s210, %s211
    %p223 = scmp.eq.s32.totalorder %s28, 1
    %p224 = por %p222, %p223
    %p226 = scmp.ne.s32.totalorder %s211, %s225
    %p227 = scmp.eq.s32.totalorder %s28, 0
    %p228 = por %p226, %p227
    %s230 = sadd.s32 %s229, 1
    %p233 = scmp.eq.s32.totalorder %s22, 1
    %p234 = scmp.ne.s32.totalorder %s229, %s231
    %p235 = scmp.eq.s32.totalorder %s22, 0
    %p236 = por %p234, %p235
    %p237 = scmp.ne.s32.totalorder %s229, %s231
    %p238 = scmp.eq.s32.totalorder %s27, 1
    %p239 = por %p237, %p238
    %p240 = scmp.ne.s32.totalorder %s231, %s232
    %p241 = scmp.eq.s32.totalorder %s27, 0
    %p242 = por %p240, %p241
    %p243 = scmp.ne.s32.totalorder %s231, %s232
    %p244 = scmp.eq.s32.totalorder %s28, 1
    %p245 = por %p243, %p244
    %p247 = scmp.ne.s32.totalorder %s232, %s246
    %p248 = scmp.eq.s32.totalorder %s28, 0
    %p249 = por %p247, %p248
    %s251 = sadd.s32 %s250, 1
    %p254 = scmp.eq.s32.totalorder %s22, 1
    %p255 = scmp.ne.s32.totalorder %s250, %s252
    %p256 = scmp.eq.s32.totalorder %s22, 0
    %p257 = por %p255, %p256
    %p258 = scmp.ne.s32.totalorder %s250, %s252
    %p259 = scmp.eq.s32.totalorder %s27, 1
    %p260 = por %p258, %p259
    %p261 = scmp.ne.s32.totalorder %s252, %s253
    %p262 = scmp.eq.s32.totalorder %s27, 0
    %p263 = por %p261, %p262
    %p264 = scmp.ne.s32.totalorder %s252, %s253
    %p265 = scmp.eq.s32.totalorder %s28, 1
    %p266 = por %p264, %p265
    %p268 = scmp.ne.s32.totalorder %s253, %s267
    %p269 = scmp.eq.s32.totalorder %s28, 0
    %p270 = por %p268, %p269
    %s272 = sadd.s32 %s271, 1
    %p275 = scmp.eq.s32.totalorder %s22, 1
    %p276 = scmp.ne.s32.totalorder %s271, %s273
    %p277 = scmp.eq.s32.totalorder %s22, 0
    %p278 = por %p276, %p277
    %p279 = scmp.ne.s32.totalorder %s271, %s273
    %p280 = scmp.eq.s32.totalorder %s27, 1
    %p281 = por %p279, %p280
    %p282 = scmp.ne.s32.totalorder %s273, %s274
    %p283 = scmp.eq.s32.totalorder %s27, 0
    %p284 = por %p282, %p283
    %p285 = scmp.ne.s32.totalorder %s273, %s274
    %p286 = scmp.eq.s32.totalorder %s28, 1
    %p287 = por %p285, %p286
    %p289 = scmp.ne.s32.totalorder %s274, %s288
    %p290 = scmp.eq.s32.totalorder %s28, 0
    %p291 = por %p289, %p290
    %s293 = sadd.s32 %s292, 1
    %p296 = scmp.eq.s32.totalorder %s22, 1
    %p297 = scmp.ne.s32.totalorder %s292, %s294
    %p298 = scmp.eq.s32.totalorder %s22, 0
    %p299 = por %p297, %p298
    %p300 = scmp.ne.s32.totalorder %s292, %s294
    %p301 = scmp.eq.s32.totalorder %s27, 1
    %p302 = por %p300, %p301
    %p303 = scmp.ne.s32.totalorder %s294, %s295
    %p304 = scmp.eq.s32.totalorder %s27, 0
    %p305 = por %p303, %p304
    %p306 = scmp.ne.s32.totalorder %s294, %s295
    %p307 = scmp.eq.s32.totalorder %s28, 1
    %p308 = por %p306, %p307
    %p310 = scmp.ne.s32.totalorder %s295, %s309
    %p311 = scmp.eq.s32.totalorder %s28, 0
    %p312 = por %p310, %p311
    %s314 = sadd.s32 %s313, 1
    %p317 = scmp.eq.s32.totalorder %s22, 1
    %p318 = scmp.ne.s32.totalorder %s313, %s315
    %p319 = scmp.eq.s32.totalorder %s22, 0
    %p320 = por %p318, %p319
    %p321 = scmp.ne.s32.totalorder %s313, %s315
    %p322 = scmp.eq.s32.totalorder %s27, 1
    %p323 = por %p321, %p322
    %p324 = scmp.ne.s32.totalorder %s315, %s316
    %p325 = scmp.eq.s32.totalorder %s27, 0
    %p326 = por %p324, %p325
    %p327 = scmp.ne.s32.totalorder %s315, %s316
    %p328 = scmp.eq.s32.totalorder %s28, 1
    %p329 = por %p327, %p328
    %p331 = scmp.ne.s32.totalorder %s316, %s330
    %p332 = scmp.eq.s32.totalorder %s28, 0
    %p333 = por %p331, %p332
    %s335 = sadd.s32 %s334, 1
    %p338 = scmp.eq.s32.totalorder %s22, 1
    %p339 = scmp.ne.s32.totalorder %s334, %s336
    %p340 = scmp.eq.s32.totalorder %s22, 0
    %p341 = por %p339, %p340
    %p342 = scmp.ne.s32.totalorder %s334, %s336
    %p343 = scmp.eq.s32.totalorder %s27, 1
    %p344 = por %p342, %p343
    %p345 = scmp.ne.s32.totalorder %s336, %s337
    %p346 = scmp.eq.s32.totalorder %s27, 0
    %p347 = por %p345, %p346
    %p348 = scmp.ne.s32.totalorder %s336, %s337
    %p349 = scmp.eq.s32.totalorder %s28, 1
    %p350 = por %p348, %p349
    %p352 = scmp.ne.s32.totalorder %s337, %s351
    %p353 = scmp.eq.s32.totalorder %s28, 0
    %p354 = por %p352, %p353
    %s355 = ssub.s32 %s22, %s29
    %p356 = scmp.eq.s32.totalorder %s355, 0
    %s358 = sadd.s32 %s357, 1
    %s359 = scalar_select %p356, %s357, %s358
    %p362 = pneg %p356
    %p363 = scmp.eq.s32.totalorder %s22, 1
    %p364 = por %p362, %p363
    %p365 = scmp.ne.s32.totalorder %s357, %s360
    %p366 = scmp.eq.s32.totalorder %s22, 0
    %p367 = por %p365, %p366
    %p368 = scmp.ne.s32.totalorder %s357, %s360
    %p369 = scmp.eq.s32.totalorder %s27, 1
    %p370 = por %p368, %p369
    %p371 = scmp.ne.s32.totalorder %s360, %s361
    %p372 = scmp.eq.s32.totalorder %s27, 0
    %p373 = por %p371, %p372
    %p374 = scmp.ne.s32.totalorder %s360, %s361
    %p375 = scmp.eq.s32.totalorder %s28, 1
    %p376 = por %p374, %p375
    %p378 = scmp.ne.s32.totalorder %s361, %s377
    %p379 = scmp.eq.s32.totalorder %s28, 0
    %p380 = por %p378, %p379
    %p381 = scmp.le.s32.totalorder 1, %s22
    %p382 = scmp.lt.s32.totalorder %s22, 3
    %p383 = pnand %p381, %p382
    %p384 = pneg %p383
    // Predicated region
    $region9: #{rztx_decoder_layer.1} parent=5 // pred_check
      _
    $region10: #{rztx_decoder_layer.1} parent=5 // pred_check_branch
      %386 = sbr.rel (%p383) target = $region12
    $region11: #{rztx_decoder_layer.1} parent=5 // pred_region
      %s387 = ssub.s32 %s22, 1
      // Predicated region
      $region13: #{rztx_decoder_layer.1} parent=11 // pred_check
        %p388 = pneg %p95
      $region14: #{rztx_decoder_layer.1} parent=11 // pred_check_branch
        %390 = sbr.rel (%p388) target = $region16
      $region15: #{rztx_decoder_layer.1} parent=11 // pred_region
        _
      $region16: #{rztx_decoder_layer.1} parent=11 // pred_fallthru
        _
      // Predicated region
      $region17: #{rztx_decoder_layer.1} parent=11 // pred_check
        %p391 = pneg %p116
      $region18: #{rztx_decoder_layer.1} parent=11 // pred_check_branch
        %393 = sbr.rel (%p391) target = $region20
      $region19: #{rztx_decoder_layer.1} parent=11 // pred_region
        _
      $region20: #{rztx_decoder_layer.1} parent=11 // pred_fallthru
        _
      // Predicated region
      $region21: #{rztx_decoder_layer.1} parent=11 // pred_check
        %p394 = pneg %p137
      $region22: #{rztx_decoder_layer.1} parent=11 // pred_check_branch
        %396 = sbr.rel (%p394) target = $region24
      $region23: #{rztx_decoder_layer.1} parent=11 // pred_region
        _
      $region24: #{rztx_decoder_layer.1} parent=11 // pred_fallthru
        _
      // Predicated region
      $region25: #{rztx_decoder_layer.1} parent=11 // pred_check
        %p397 = pneg %p158
      $region26: #{rztx_decoder_layer.1} parent=11 // pred_check_branch
        %399 = sbr.rel (%p397) target = $region28
      $region27: #{rztx_decoder_layer.1} parent=11 // pred_region
        _
      $region28: #{rztx_decoder_layer.1} parent=11 // pred_fallthru
        _
      // Predicated region
      $region29: #{rztx_decoder_layer.1} parent=11 // pred_check
        %p400 = pneg %p179
      $region30: #{rztx_decoder_layer.1} parent=11 // pred_check_branch
        %402 = sbr.rel (%p400) target = $region32
      $region31: #{rztx_decoder_layer.1} parent=11 // pred_region
        _
      $region32: #{rztx_decoder_layer.1} parent=11 // pred_fallthru
        _
      // Predicated region
      $region33: #{rztx_decoder_layer.1} parent=11 // pred_check
        %p403 = pneg %p200
      $region34: #{rztx_decoder_layer.1} parent=11 // pred_check_branch
        %405 = sbr.rel (%p403) target = $region36
      $region35: #{rztx_decoder_layer.1} parent=11 // pred_region
        _
      $region36: #{rztx_decoder_layer.1} parent=11 // pred_fallthru
        _
      // Predicated region
      $region37: #{rztx_decoder_layer.1} parent=11 // pred_check
        %p406 = pneg %p221
      $region38: #{rztx_decoder_layer.1} parent=11 // pred_check_branch
        %408 = sbr.rel (%p406) target = $region40
      $region39: #{rztx_decoder_layer.1} parent=11 // pred_region
        _
      $region40: #{rztx_decoder_layer.1} parent=11 // pred_fallthru
        _
      // Predicated region
      $region41: #{rztx_decoder_layer.1} parent=11 // pred_check
        %p409 = pneg %p242
      $region42: #{rztx_decoder_layer.1} parent=11 // pred_check_branch
        %411 = sbr.rel (%p409) target = $region44
      $region43: #{rztx_decoder_layer.1} parent=11 // pred_region
        _
      $region44: #{rztx_decoder_layer.1} parent=11 // pred_fallthru
        _
      // Predicated region
      $region45: #{rztx_decoder_layer.1} parent=11 // pred_check
        %p412 = pneg %p263
      $region46: #{rztx_decoder_layer.1} parent=11 // pred_check_branch
        %414 = sbr.rel (%p412) target = $region48
      $region47: #{rztx_decoder_layer.1} parent=11 // pred_region
        _
      $region48: #{rztx_decoder_layer.1} parent=11 // pred_fallthru
        _
      // Predicated region
      $region49: #{rztx_decoder_layer.1} parent=11 // pred_check
        %p415 = pneg %p284
      $region50: #{rztx_decoder_layer.1} parent=11 // pred_check_branch
        %417 = sbr.rel (%p415) target = $region52
      $region51: #{rztx_decoder_layer.1} parent=11 // pred_region
        _
      $region52: #{rztx_decoder_layer.1} parent=11 // pred_fallthru
        _
      // Predicated region
      $region53: #{rztx_decoder_layer.1} parent=11 // pred_check
        %p418 = pneg %p305
      $region54: #{rztx_decoder_layer.1} parent=11 // pred_check_branch
        %420 = sbr.rel (%p418) target = $region56
      $region55: #{rztx_decoder_layer.1} parent=11 // pred_region
        _
      $region56: #{rztx_decoder_layer.1} parent=11 // pred_fallthru
        _
      // Predicated region
      $region57: #{rztx_decoder_layer.1} parent=11 // pred_check
        %p421 = pneg %p326
      $region58: #{rztx_decoder_layer.1} parent=11 // pred_check_branch
        %423 = sbr.rel (%p421) target = $region60
      $region59: #{rztx_decoder_layer.1} parent=11 // pred_region
        _
      $region60: #{rztx_decoder_layer.1} parent=11 // pred_fallthru
        _
      // Predicated region
      $region61: #{rztx_decoder_layer.1} parent=11 // pred_check
        %p424 = pneg %p347
      $region62: #{rztx_decoder_layer.1} parent=11 // pred_check_branch
        %426 = sbr.rel (%p424) target = $region64
      $region63: #{rztx_decoder_layer.1} parent=11 // pred_region
        _
      $region64: #{rztx_decoder_layer.1} parent=11 // pred_fallthru
        _
    $region12: #{rztx_decoder_layer.1} parent=5 // pred_fallthru
      _
    %p427 = scmp.lt.s32.totalorder %s22, 2
    // Predicated region
    $region65: #{rztx_decoder_layer.1} parent=5 // pred_check
      %p428 = pneg %p427
    $region66: #{rztx_decoder_layer.1} parent=5 // pred_check_branch
      %430 = sbr.rel (%p428) target = $region68
    $region67: #{rztx_decoder_layer.1} parent=5 // pred_region
      // Predicated region
      $region69: #{rztx_decoder_layer.1} parent=67 // pred_check
        %p431 = pneg %p42
      $region70: #{rztx_decoder_layer.1} parent=67 // pred_check_branch
        %433 = sbr.rel (%p431) target = $region72
      $region71: #{rztx_decoder_layer.1} parent=67 // pred_region
        %p434 = scmp.lt.s32.totalorder %s22, 1
        %s435 = scalar_select %p434, %s22, 1
        %s436 = smul.addr %s435, 8
        %s437 = scalar_lea.vmem %s0, %s436
      $region72: #{rztx_decoder_layer.1} parent=67 // pred_fallthru
        _
      // Predicated region
      $region73: #{rztx_decoder_layer.1} parent=67 // pred_check
        %p438 = pneg %p68
      $region74: #{rztx_decoder_layer.1} parent=67 // pred_check_branch
        %440 = sbr.rel (%p438) target = $region76
      $region75: #{rztx_decoder_layer.1} parent=67 // pred_region
        %p441 = scmp.lt.s32.totalorder %s22, 1
        %s442 = scalar_select %p441, %s22, 1
        %s443 = smul.addr %s442, 2
        %s444 = smul.addr %s443, 8
        %s445 = scalar_lea.vmem %s1, %s444
      $region76: #{rztx_decoder_layer.1} parent=67 // pred_fallthru
        _
    $region68: #{rztx_decoder_layer.1} parent=5 // pred_fallthru
      _
    %p446 = scmp.le.s32.totalorder 1, %s22
    %p447 = scmp.lt.s32.totalorder %s22, 3
    %p448 = pnand %p446, %p447
    %p449 = pneg %p448
    // Predicated region
    $region77: #{rztx_decoder_layer.1} parent=5 // pred_check
      _
    $region78: #{rztx_decoder_layer.1} parent=5 // pred_check_branch
      %451 = sbr.rel (%p448) target = $region80
    $region79: #{rztx_decoder_layer.1} parent=5 // pred_region
      %s452 = ssub.s32 %s22, 1
      %p453 = scmp.lt.s32.totalorder %s27, 1
      %s454 = scalar_select %p453, %s27, 1
      %s455 = smul.addr %s454, 8
      %s456 = scalar_lea.vmem %s0, %s455
      %p457 = pneg %p48
      %p458 = pneg %p45
      %p459 = scmp.lt.s32.totalorder %s27, 1
      %s460 = scalar_select %p459, %s27, 1
      %s461 = smul.addr %s460, 2
      %s462 = smul.addr %s461, 8
      %s463 = scalar_lea.vmem %s1, %s462
      %p464 = pneg %p74
      %p465 = pneg %p71
      %p466 = pneg %p95
      %p467 = pneg %p92
      %p468 = pneg %p116
      %p469 = pneg %p113
      %p470 = pneg %p137
      %p471 = pneg %p134
      %p472 = pneg %p158
      %p473 = pneg %p155
      %p474 = pneg %p179
      %p475 = pneg %p176
      %p476 = pneg %p200
      %p477 = pneg %p197
      %p478 = pneg %p221
      %p479 = pneg %p218
      %p480 = pneg %p242
      %p481 = pneg %p239
      %p482 = pneg %p263
      %p483 = pneg %p260
      %p484 = pneg %p284
      %p485 = pneg %p281
      %p486 = pneg %p305
      %p487 = pneg %p302
      %p488 = pneg %p326
      %p489 = pneg %p323
      %p490 = pneg %p347
      %p491 = pneg %p344
      %p492 = pneg %p373
      %p493 = pneg %p370
      %p494 = scmp.lt.s32.totalorder %s27, 1
      %s495 = scalar_select %p494, %s27, 1
      %s496 = smul.addr %s495, 8
      %s497 = scalar_lea.vmem %s15, %s496
      %p498 = scmp.lt.s32.totalorder %s27, 1
      %s499 = scalar_select %p498, %s27, 1
      %s500 = smul.addr %s499, 8
      %s501 = scalar_lea.vmem %s0, %s500
      %p502 = scmp.lt.s32.totalorder %s27, 1
      %s503 = scalar_select %p502, %s27, 1
      %s504 = smul.addr %s503, 2
      %s505 = smul.addr %s504, 8
      %s506 = scalar_lea.vmem %s1, %s505
      %p507 = scmp.lt.s32.totalorder %s27, 1
      %s508 = scalar_select %p507, %s27, 1
      %s509 = smul.addr %s508, 8
      %s510 = scalar_lea.vmem %s15, %s509
      %s511 = sld [smem:[#allocation2]]
      %v512 = vld [vmem:[%s501] sm:$0xff]
      %v513 = vld [vmem:[%s506] sm:$0xff]
      %v514 = vld [vmem:[%s506 + $0x8] sm:$0xff]
      %v515 = vld [vmem:[%s2] sm:$0xff]
      %v516 = vld [vmem:[%s2 + $0x8] sm:$0xff]
      %v517 = vld [vmem:[%s2 + $0x10] sm:$0xff]
      %v518 = vld [vmem:[%s2 + $0x18] sm:$0xff]
      %v519 = vld [vmem:[%s3] sm:$0x1]
      %v521 = vlaneseq
      %v522 = vshrl.u32 %v521, 7
      %v523 = vsub.s32 0, %v522
      %v524 = vrot.slane %v519, %v523
      %vm526 = vcmask 261120
      %v528 = vsel %vm526, %v512, 0
      %530 = vmatprep.subr.mxu0 0.0
      %531 = vmatpush1.msra.mxu0 0.0
      %532 = vmatprep.subr.mxu0 0.0
      %533 = vmatpush1.msra.mxu0 0.0
      %534 = vmatprep.subr.mxu0 0.0
      %535 = vmatpush1.msra.mxu0 0.0
      %536 = vmatprep.subr.mxu0 0.0
      %537 = vmatpush1.msra.mxu0 0.0
      %538 = vmatprep.subr.mxu0 0.0
      %539 = vmatpush1.msra.mxu0 0.0
      %540 = vmatprep.subr.mxu0 0.0
      %541 = vmatpush1.msra.mxu0 0.0
      %542 = vmatprep.subr.mxu0 0.0
      %543 = vmatpush1.msra.mxu0 0.0
      %544 = vmatprep.subr.mxu0 0.0
      %545 = vmatpush1.msra.mxu0 0.0
      %546 = vmatprep.subr.mxu0 0.0
      %547 = vmatpush1.msra.mxu0 0.0
      %548 = vmatprep.subr.mxu0 0.0
      %549 = vmatpush1.msra.mxu0 0.0
      %550 = vmatprep.subr.mxu0 0.0
      %551 = vmatpush1.msra.mxu0 0.0
      %552 = vmatprep.subr.mxu0 0.0
      %553 = vmatpush1.msra.mxu0 0.0
      %554 = vmatprep.subr.mxu0 0.0
      %555 = vmatpush1.msra.mxu0 %v518
      %556 = vmatprep.subr.mxu0 0.0
      %557 = vmatpush1.msra.mxu0 %v517
      %558 = vmatprep.subr.mxu0 0.0
      %559 = vmatpush1.msra.mxu0 %v516
      %560 = vmatprep.subr.mxu0 0.0
      %561 = vmatpush1.msra.mxu0 %v515
      %562 = vmatprep.subr.mxu0 0.0
      %563 = vmatpush2.msra.mxu0 0.0
      %564 = vmatprep.subr.mxu0 0.0
      %565 = vmatpush2.msra.mxu0 0.0
      %566 = vmatprep.subr.mxu0 0.0
      %567 = vmatpush2.msra.mxu0 0.0
      %568 = vmatprep.subr.mxu0 0.0
      %569 = vmatpush2.msra.mxu0 0.0
      %570 = vmatprep.subr.mxu0 0.0
      %571 = vmatpush2.msra.mxu0 0.0
      %572 = vmatprep.subr.mxu0 0.0
      %573 = vmatpush2.msra.mxu0 0.0
      %574 = vmatprep.subr.mxu0 0.0
      %575 = vmatpush2.msra.mxu0 0.0
      %576 = vmatprep.subr.mxu0 0.0
      %577 = vmatpush2.msra.mxu0 0.0
      %578 = vmatprep.subr.mxu0 0.0
      %579 = vmatpush2.msra.mxu0 0.0
      %580 = vmatprep.subr.mxu0 0.0
      %581 = vmatpush2.msra.mxu0 0.0
      %582 = vmatprep.subr.mxu0 0.0
      %583 = vmatpush2.msra.mxu0 0.0
      %584 = vmatprep.subr.mxu0 0.0
      %585 = vmatpush2.msra.mxu0 0.0
      %586 = vmatprep.subr.mxu0 0.0
      %587 = vmatpush2.msra.mxu0 0.0
      %588 = vmatprep.subr.mxu0 0.0
      %589 = vmatpush2.msra.mxu0 0.0
      %590 = vmatprep.subr.mxu0 0.0
      %591 = vmatpush2.msra.mxu0 0.0
      %592 = vmatprep.subr.mxu0 0.0
      %593 = vmatpush2.msra.mxu0 0.0
      %594 = vmatprep.mubr.f32.mxu0 0.0
      %595 = vmatmul.mubr.f32.gmra.mxu0 %v528
      %v596 = vpop.f32.mrf.mxu0
      %v597 = vadd.f32 %v524, %v596
      %v598 = vpop.f32.mrf.mxu0
      %599 = vdwg.mxu0
      %601 = vrot.lane.b32.xlu0 %v597, 96
      %v602 = vpop.permute.xlu0 %601
      %vm603 = vcmask 64512
      %v604 = vsel %vm603, %v597, 0
      %v606 = vsel %vm603, %v602, 0
      %608 = vmatprep.subr.mxu0 0.0
      %609 = vmatpush1.xpose.msra.mxu0 0.0
      %610 = vmatprep.subr.mxu0 0.0
      %611 = vmatpush1.xpose.msra.mxu0 0.0
      %612 = vmatprep.subr.mxu0 0.0
      %613 = vmatpush1.xpose.msra.mxu0 0.0
      %614 = vmatprep.subr.mxu0 0.0
      %615 = vmatpush1.xpose.msra.mxu0 0.0
      %616 = vmatprep.subr.mxu0 0.0
      %617 = vmatpush1.xpose.msra.mxu0 0.0
      %618 = vmatprep.subr.mxu0 0.0
      %619 = vmatpush1.xpose.msra.mxu0 0.0
      %620 = vmatprep.subr.mxu0 0.0
      %621 = vmatpush1.xpose.msra.mxu0 0.0
      %622 = vmatprep.subr.mxu0 0.0
      %623 = vmatpush1.xpose.msra.mxu0 0.0
      %624 = vmatprep.subr.mxu0 0.0
      %625 = vmatpush1.xpose.msra.mxu0 0.0
      %626 = vmatprep.subr.mxu0 0.0
      %627 = vmatpush1.xpose.msra.mxu0 0.0
      %628 = vmatprep.subr.mxu0 0.0
      %629 = vmatpush1.xpose.msra.mxu0 0.0
      %630 = vmatprep.subr.mxu0 0.0
      %631 = vmatpush1.xpose.msra.mxu0 0.0
      %632 = vmatprep.subr.mxu0 0.0
      %633 = vmatpush1.xpose.msra.mxu0 0.0
      %634 = vmatprep.subr.mxu0 0.0
      %635 = vmatpush1.xpose.msra.mxu0 0.0
      %636 = vmatprep.subr.mxu0 0.0
      %637 = vmatpush1.xpose.msra.mxu0 0.0
      %638 = vmatprep.subr.mxu0 0.0
      %639 = vmatpush1.xpose.msra.mxu0 %v606
      %640 = vmatprep.subr.mxu0 0.0
      %641 = vmatpush2.xpose.msra.mxu0 0.0
      %642 = vmatprep.subr.mxu0 0.0
      %643 = vmatpush2.xpose.msra.mxu0 0.0
      %644 = vmatprep.subr.mxu0 0.0
      %645 = vmatpush2.xpose.msra.mxu0 0.0
      %646 = vmatprep.subr.mxu0 0.0
      %647 = vmatpush2.xpose.msra.mxu0 0.0
      %648 = vmatprep.subr.mxu0 0.0
      %649 = vmatpush2.xpose.msra.mxu0 0.0
      %650 = vmatprep.subr.mxu0 0.0
      %651 = vmatpush2.xpose.msra.mxu0 0.0
      %652 = vmatprep.subr.mxu0 0.0
      %653 = vmatpush2.xpose.msra.mxu0 0.0
      %654 = vmatprep.subr.mxu0 0.0
      %655 = vmatpush2.xpose.msra.mxu0 0.0
      %656 = vmatprep.subr.mxu0 0.0
      %657 = vmatpush2.xpose.msra.mxu0 0.0
      %658 = vmatprep.subr.mxu0 0.0
      %659 = vmatpush2.xpose.msra.mxu0 0.0
      %660 = vmatprep.subr.mxu0 0.0
      %661 = vmatpush2.xpose.msra.mxu0 0.0
      %662 = vmatprep.subr.mxu0 0.0
      %663 = vmatpush2.xpose.msra.mxu0 0.0
      %664 = vmatprep.subr.mxu0 0.0
      %665 = vmatpush2.xpose.msra.mxu0 0.0
      %666 = vmatprep.subr.mxu0 0.0
      %667 = vmatpush2.xpose.msra.mxu0 0.0
      %668 = vmatprep.subr.mxu0 0.0
      %669 = vmatpush2.xpose.msra.mxu0 0.0
      %670 = vmatprep.subr.mxu0 0.0
      %671 = vmatpush2.xpose.msra.mxu0 0.0
      %672 = vmatprep.mubr.f32.mxu0 0.0
      %673 = vmatmul.mubr.f32.gmra.mxu0 %v604
      %v674 = vpop.f32.mrf.mxu0
      %v675 = vadd.f32 0.0, %v674
      %v676 = vpop.f32.mrf.mxu0
      %677 = vdwg.mxu0
      %v678 = vmul.f32 %v675, 0.35355338
      %v679 = vsel %vm603, %v678, -inf
      %680 = vmax.xlane.f32.xlu0 %v679
      %v681 = vpop.xlane.xlu0 %680
      %v682 = vsub.f32 %v678, %v681
      %v683 = vmul.f32 %v682, 1.442695
      %v684 = vpow.pop %v683
      %v685 = vsel %vm603, %v684, 0.0
      %686 = vadd.xlane.f32.xlu0 %v685
      %v687 = vpop.xlane.xlu0 %686
      %v688 = vrcp.pop %v687
      %v689 = vmul.f32 %v684, %v688
      %690 = vrot.lane.b32.xlu0 %v597, 64
      %v691 = vpop.permute.xlu0 %690
      %v694 = vsel %vm603, %v689, 0
      %696 = vmatprep.subr.mxu0 0.0
      %697 = vmatpush1.msra.mxu0 0.0
      %698 = vmatprep.subr.mxu0 0.0
      %699 = vmatpush1.msra.mxu0 0.0
      %700 = vmatprep.subr.mxu0 0.0
      %701 = vmatpush1.msra.mxu0 0.0
      %702 = vmatprep.subr.mxu0 0.0
      %703 = vmatpush1.msra.mxu0 0.0
      %704 = vmatprep.subr.mxu0 0.0
      %705 = vmatpush1.msra.mxu0 0.0
      %706 = vmatprep.subr.mxu0 0.0
      %707 = vmatpush1.msra.mxu0 0.0
      %708 = vmatprep.subr.mxu0 0.0
      %709 = vmatpush1.msra.mxu0 0.0
      %710 = vmatprep.subr.mxu0 0.0
      %711 = vmatpush1.msra.mxu0 0.0
      %712 = vmatprep.subr.mxu0 0.0
      %713 = vmatpush1.msra.mxu0 0.0
      %714 = vmatprep.subr.mxu0 0.0
      %715 = vmatpush1.msra.mxu0 0.0
      %716 = vmatprep.subr.mxu0 0.0
      %717 = vmatpush1.msra.mxu0 0.0
      %718 = vmatprep.subr.mxu0 0.0
      %719 = vmatpush1.msra.mxu0 0.0
      %720 = vmatprep.subr.mxu0 0.0
      %721 = vmatpush1.msra.mxu0 0.0
      %722 = vmatprep.subr.mxu0 0.0
      %723 = vmatpush1.msra.mxu0 0.0
      %724 = vmatprep.subr.mxu0 0.0
      %725 = vmatpush1.msra.mxu0 0.0
      %726 = vmatprep.subr.mxu0 0.0
      %727 = vmatpush1.msra.mxu0 %v691
      %728 = vmatprep.subr.mxu0 0.0
      %729 = vmatpush2.msra.mxu0 0.0
      %730 = vmatprep.subr.mxu0 0.0
      %731 = vmatpush2.msra.mxu0 0.0
      %732 = vmatprep.subr.mxu0 0.0
      %733 = vmatpush2.msra.mxu0 0.0
      %734 = vmatprep.subr.mxu0 0.0
      %735 = vmatpush2.msra.mxu0 0.0
      %736 = vmatprep.subr.mxu0 0.0
      %737 = vmatpush2.msra.mxu0 0.0
      %738 = vmatprep.subr.mxu0 0.0
      %739 = vmatpush2.msra.mxu0 0.0
      %740 = vmatprep.subr.mxu0 0.0
      %741 = vmatpush2.msra.mxu0 0.0
      %742 = vmatprep.subr.mxu0 0.0
      %743 = vmatpush2.msra.mxu0 0.0
      %744 = vmatprep.subr.mxu0 0.0
      %745 = vmatpush2.msra.mxu0 0.0
      %746 = vmatprep.subr.mxu0 0.0
      %747 = vmatpush2.msra.mxu0 0.0
      %748 = vmatprep.subr.mxu0 0.0
      %749 = vmatpush2.msra.mxu0 0.0
      %750 = vmatprep.subr.mxu0 0.0
      %751 = vmatpush2.msra.mxu0 0.0
      %752 = vmatprep.subr.mxu0 0.0
      %753 = vmatpush2.msra.mxu0 0.0
      %754 = vmatprep.subr.mxu0 0.0
      %755 = vmatpush2.msra.mxu0 0.0
      %756 = vmatprep.subr.mxu0 0.0
      %757 = vmatpush2.msra.mxu0 0.0
      %758 = vmatprep.subr.mxu0 0.0
      %759 = vmatpush2.msra.mxu0 0.0
      %760 = vmatprep.mubr.f32.mxu0 0.0
      %761 = vmatmul.mubr.f32.gmra.mxu0 %v694
      %v762 = vpop.f32.mrf.mxu0
      %v763 = vadd.f32 0.0, %v762
      %v764 = vpop.f32.mrf.mxu0
      %765 = vdwg.mxu0
      %766 = vrot.lane.b32.xlu0 %v597, 120
      %v767 = vpop.permute.xlu0 %766
      %768 = vrot.lane.b32.xlu0 %v597, 88
      %v769 = vpop.permute.xlu0 %768
      %v770 = vsel %vm603, %v767, 0
      %v772 = vsel %vm603, %v769, 0
      %774 = vmatprep.subr.mxu0 0.0
      %775 = vmatpush1.xpose.msra.mxu0 0.0
      %776 = vmatprep.subr.mxu0 0.0
      %777 = vmatpush1.xpose.msra.mxu0 0.0
      %778 = vmatprep.subr.mxu0 0.0
      %779 = vmatpush1.xpose.msra.mxu0 0.0
      %780 = vmatprep.subr.mxu0 0.0
      %781 = vmatpush1.xpose.msra.mxu0 0.0
      %782 = vmatprep.subr.mxu0 0.0
      %783 = vmatpush1.xpose.msra.mxu0 0.0
      %784 = vmatprep.subr.mxu0 0.0
      %785 = vmatpush1.xpose.msra.mxu0 0.0
      %786 = vmatprep.subr.mxu0 0.0
      %787 = vmatpush1.xpose.msra.mxu0 0.0
      %788 = vmatprep.subr.mxu0 0.0
      %789 = vmatpush1.xpose.msra.mxu0 0.0
      %790 = vmatprep.subr.mxu0 0.0
      %791 = vmatpush1.xpose.msra.mxu0 0.0
      %792 = vmatprep.subr.mxu0 0.0
      %793 = vmatpush1.xpose.msra.mxu0 0.0
      %794 = vmatprep.subr.mxu0 0.0
      %795 = vmatpush1.xpose.msra.mxu0 0.0
      %796 = vmatprep.subr.mxu0 0.0
      %797 = vmatpush1.xpose.msra.mxu0 0.0
      %798 = vmatprep.subr.mxu0 0.0
      %799 = vmatpush1.xpose.msra.mxu0 0.0
      %800 = vmatprep.subr.mxu0 0.0
      %801 = vmatpush1.xpose.msra.mxu0 0.0
      %802 = vmatprep.subr.mxu0 0.0
      %803 = vmatpush1.xpose.msra.mxu0 0.0
      %804 = vmatprep.subr.mxu0 0.0
      %805 = vmatpush1.xpose.msra.mxu0 %v772
      %806 = vmatprep.subr.mxu0 0.0
      %807 = vmatpush2.xpose.msra.mxu0 0.0
      %808 = vmatprep.subr.mxu0 0.0
      %809 = vmatpush2.xpose.msra.mxu0 0.0
      %810 = vmatprep.subr.mxu0 0.0
      %811 = vmatpush2.xpose.msra.mxu0 0.0
      %812 = vmatprep.subr.mxu0 0.0
      %813 = vmatpush2.xpose.msra.mxu0 0.0
      %814 = vmatprep.subr.mxu0 0.0
      %815 = vmatpush2.xpose.msra.mxu0 0.0
      %816 = vmatprep.subr.mxu0 0.0
      %817 = vmatpush2.xpose.msra.mxu0 0.0
      %818 = vmatprep.subr.mxu0 0.0
      %819 = vmatpush2.xpose.msra.mxu0 0.0
      %820 = vmatprep.subr.mxu0 0.0
      %821 = vmatpush2.xpose.msra.mxu0 0.0
      %822 = vmatprep.subr.mxu0 0.0
      %823 = vmatpush2.xpose.msra.mxu0 0.0
      %824 = vmatprep.subr.mxu0 0.0
      %825 = vmatpush2.xpose.msra.mxu0 0.0
      %826 = vmatprep.subr.mxu0 0.0
      %827 = vmatpush2.xpose.msra.mxu0 0.0
      %828 = vmatprep.subr.mxu0 0.0
      %829 = vmatpush2.xpose.msra.mxu0 0.0
      %830 = vmatprep.subr.mxu0 0.0
      %831 = vmatpush2.xpose.msra.mxu0 0.0
      %832 = vmatprep.subr.mxu0 0.0
      %833 = vmatpush2.xpose.msra.mxu0 0.0
      %834 = vmatprep.subr.mxu0 0.0
      %835 = vmatpush2.xpose.msra.mxu0 0.0
      %836 = vmatprep.subr.mxu0 0.0
      %837 = vmatpush2.xpose.msra.mxu0 0.0
      %838 = vmatprep.mubr.f32.mxu0 0.0
      %839 = vmatmul.mubr.f32.gmra.mxu0 %v770
      %v840 = vpop.f32.mrf.mxu0
      %v841 = vadd.f32 0.0, %v840
      %v842 = vpop.f32.mrf.mxu0
      %843 = vdwg.mxu0
      %v844 = vmul.f32 %v841, 0.35355338
      %v845 = vsel %vm603, %v844, -inf
      %846 = vmax.xlane.f32.xlu0 %v845
      %v847 = vpop.xlane.xlu0 %846
      %v848 = vsub.f32 %v844, %v847
      %v849 = vmul.f32 %v848, 1.442695
      %v850 = vpow.pop %v849
      %v851 = vsel %vm603, %v850, 0.0
      %852 = vadd.xlane.f32.xlu0 %v851
      %v853 = vpop.xlane.xlu0 %852
      %v854 = vrcp.pop %v853
      %v855 = vmul.f32 %v850, %v854
      %856 = vrot.lane.b32.xlu0 %v597, 56
      %v857 = vpop.permute.xlu0 %856
      %v860 = vsel %vm603, %v855, 0
      %862 = vmatprep.subr.mxu0 0.0
      %863 = vmatpush1.msra.mxu0 0.0
      %864 = vmatprep.subr.mxu0 0.0
      %865 = vmatpush1.msra.mxu0 0.0
      %866 = vmatprep.subr.mxu0 0.0
      %867 = vmatpush1.msra.mxu0 0.0
      %868 = vmatprep.subr.mxu0 0.0
      %869 = vmatpush1.msra.mxu0 0.0
      %870 = vmatprep.subr.mxu0 0.0
      %871 = vmatpush1.msra.mxu0 0.0
      %872 = vmatprep.subr.mxu0 0.0
      %873 = vmatpush1.msra.mxu0 0.0
      %874 = vmatprep.subr.mxu0 0.0
      %875 = vmatpush1.msra.mxu0 0.0
      %876 = vmatprep.subr.mxu0 0.0
      %877 = vmatpush1.msra.mxu0 0.0
      %878 = vmatprep.subr.mxu0 0.0
      %879 = vmatpush1.msra.mxu0 0.0
      %880 = vmatprep.subr.mxu0 0.0
      %881 = vmatpush1.msra.mxu0 0.0
      %882 = vmatprep.subr.mxu0 0.0
      %883 = vmatpush1.msra.mxu0 0.0
      %884 = vmatprep.subr.mxu0 0.0
      %885 = vmatpush1.msra.mxu0 0.0
      %886 = vmatprep.subr.mxu0 0.0
      %887 = vmatpush1.msra.mxu0 0.0
      %888 = vmatprep.subr.mxu0 0.0
      %889 = vmatpush1.msra.mxu0 0.0
      %890 = vmatprep.subr.mxu0 0.0
      %891 = vmatpush1.msra.mxu0 0.0
      %892 = vmatprep.subr.mxu0 0.0
      %893 = vmatpush1.msra.mxu0 %v857
      %894 = vmatprep.subr.mxu0 0.0
      %895 = vmatpush2.msra.mxu0 0.0
      %896 = vmatprep.subr.mxu0 0.0
      %897 = vmatpush2.msra.mxu0 0.0
      %898 = vmatprep.subr.mxu0 0.0
      %899 = vmatpush2.msra.mxu0 0.0
      %900 = vmatprep.subr.mxu0 0.0
      %901 = vmatpush2.msra.mxu0 0.0
      %902 = vmatprep.subr.mxu0 0.0
      %903 = vmatpush2.msra.mxu0 0.0
      %904 = vmatprep.subr.mxu0 0.0
      %905 = vmatpush2.msra.mxu0 0.0
      %906 = vmatprep.subr.mxu0 0.0
      %907 = vmatpush2.msra.mxu0 0.0
      %908 = vmatprep.subr.mxu0 0.0
      %909 = vmatpush2.msra.mxu0 0.0
      %910 = vmatprep.subr.mxu0 0.0
      %911 = vmatpush2.msra.mxu0 0.0
      %912 = vmatprep.subr.mxu0 0.0
      %913 = vmatpush2.msra.mxu0 0.0
      %914 = vmatprep.subr.mxu0 0.0
      %915 = vmatpush2.msra.mxu0 0.0
      %916 = vmatprep.subr.mxu0 0.0
      %917 = vmatpush2.msra.mxu0 0.0
      %918 = vmatprep.subr.mxu0 0.0
      %919 = vmatpush2.msra.mxu0 0.0
      %920 = vmatprep.subr.mxu0 0.0
      %921 = vmatpush2.msra.mxu0 0.0
      %922 = vmatprep.subr.mxu0 0.0
      %923 = vmatpush2.msra.mxu0 0.0
      %924 = vmatprep.subr.mxu0 0.0
      %925 = vmatpush2.msra.mxu0 0.0
      %926 = vmatprep.mubr.f32.mxu0 0.0
      %927 = vmatmul.mubr.f32.gmra.mxu0 %v860
      %v928 = vpop.f32.mrf.mxu0
      %v929 = vadd.f32 0.0, %v928
      %v930 = vpop.f32.mrf.mxu0
      %931 = vdwg.mxu0
      %932 = vrot.lane.b32.xlu0 %v597, 112
      %v933 = vpop.permute.xlu0 %932
      %934 = vrot.lane.b32.xlu0 %v597, 80
      %v935 = vpop.permute.xlu0 %934
      %v936 = vsel %vm603, %v933, 0
      %v938 = vsel %vm603, %v935, 0
      %940 = vmatprep.subr.mxu0 0.0
      %941 = vmatpush1.xpose.msra.mxu0 0.0
      %942 = vmatprep.subr.mxu0 0.0
      %943 = vmatpush1.xpose.msra.mxu0 0.0
      %944 = vmatprep.subr.mxu0 0.0
      %945 = vmatpush1.xpose.msra.mxu0 0.0
      %946 = vmatprep.subr.mxu0 0.0
      %947 = vmatpush1.xpose.msra.mxu0 0.0
      %948 = vmatprep.subr.mxu0 0.0
      %949 = vmatpush1.xpose.msra.mxu0 0.0
      %950 = vmatprep.subr.mxu0 0.0
      %951 = vmatpush1.xpose.msra.mxu0 0.0
      %952 = vmatprep.subr.mxu0 0.0
      %953 = vmatpush1.xpose.msra.mxu0 0.0
      %954 = vmatprep.subr.mxu0 0.0
      %955 = vmatpush1.xpose.msra.mxu0 0.0
      %956 = vmatprep.subr.mxu0 0.0
      %957 = vmatpush1.xpose.msra.mxu0 0.0
      %958 = vmatprep.subr.mxu0 0.0
      %959 = vmatpush1.xpose.msra.mxu0 0.0
      %960 = vmatprep.subr.mxu0 0.0
      %961 = vmatpush1.xpose.msra.mxu0 0.0
      %962 = vmatprep.subr.mxu0 0.0
      %963 = vmatpush1.xpose.msra.mxu0 0.0
      %964 = vmatprep.subr.mxu0 0.0
      %965 = vmatpush1.xpose.msra.mxu0 0.0
      %966 = vmatprep.subr.mxu0 0.0
      %967 = vmatpush1.xpose.msra.mxu0 0.0
      %968 = vmatprep.subr.mxu0 0.0
      %969 = vmatpush1.xpose.msra.mxu0 0.0
      %970 = vmatprep.subr.mxu0 0.0
      %971 = vmatpush1.xpose.msra.mxu0 %v938
      %972 = vmatprep.subr.mxu0 0.0
      %973 = vmatpush2.xpose.msra.mxu0 0.0
      %974 = vmatprep.subr.mxu0 0.0
      %975 = vmatpush2.xpose.msra.mxu0 0.0
      %976 = vmatprep.subr.mxu0 0.0
      %977 = vmatpush2.xpose.msra.mxu0 0.0
      %978 = vmatprep.subr.mxu0 0.0
      %979 = vmatpush2.xpose.msra.mxu0 0.0
      %980 = vmatprep.subr.mxu0 0.0
      %981 = vmatpush2.xpose.msra.mxu0 0.0
      %982 = vmatprep.subr.mxu0 0.0
      %983 = vmatpush2.xpose.msra.mxu0 0.0
      %984 = vmatprep.subr.mxu0 0.0
      %985 = vmatpush2.xpose.msra.mxu0 0.0
      %986 = vmatprep.subr.mxu0 0.0
      %987 = vmatpush2.xpose.msra.mxu0 0.0
      %988 = vmatprep.subr.mxu0 0.0
      %989 = vmatpush2.xpose.msra.mxu0 0.0
      %990 = vmatprep.subr.mxu0 0.0
      %991 = vmatpush2.xpose.msra.mxu0 0.0
      %992 = vmatprep.subr.mxu0 0.0
      %993 = vmatpush2.xpose.msra.mxu0 0.0
      %994 = vmatprep.subr.mxu0 0.0
      %995 = vmatpush2.xpose.msra.mxu0 0.0
      %996 = vmatprep.subr.mxu0 0.0
      %997 = vmatpush2.xpose.msra.mxu0 0.0
      %998 = vmatprep.subr.mxu0 0.0
      %999 = vmatpush2.xpose.msra.mxu0 0.0
      %1000 = vmatprep.subr.mxu0 0.0
      %1001 = vmatpush2.xpose.msra.mxu0 0.0
      %1002 = vmatprep.subr.mxu0 0.0
      %1003 = vmatpush2.xpose.msra.mxu0 0.0
      %1004 = vmatprep.mubr.f32.mxu0 0.0
      %1005 = vmatmul.mubr.f32.gmra.mxu0 %v936
      %v1006 = vpop.f32.mrf.mxu0
      %v1007 = vadd.f32 0.0, %v1006
      %v1008 = vpop.f32.mrf.mxu0
      %1009 = vdwg.mxu0
      %v1010 = vmul.f32 %v1007, 0.35355338
      %v1011 = vsel %vm603, %v1010, -inf
      %1012 = vmax.xlane.f32.xlu0 %v1011
      %v1013 = vpop.xlane.xlu0 %1012
      %v1014 = vsub.f32 %v1010, %v1013
      %v1015 = vmul.f32 %v1014, 1.442695
      %v1016 = vpow.pop %v1015
      %v1017 = vsel %vm603, %v1016, 0.0
      %1018 = vadd.xlane.f32.xlu0 %v1017
      %v1019 = vpop.xlane.xlu0 %1018
      %v1020 = vrcp.pop %v1019
      %v1021 = vmul.f32 %v1016, %v1020
      %1022 = vrot.lane.b32.xlu0 %v597, 48
      %v1023 = vpop.permute.xlu0 %1022
      %v1026 = vsel %vm603, %v1021, 0
      %1028 = vmatprep.subr.mxu0 0.0
      %1029 = vmatpush1.msra.mxu0 0.0
      %1030 = vmatprep.subr.mxu0 0.0
      %1031 = vmatpush1.msra.mxu0 0.0
      %1032 = vmatprep.subr.mxu0 0.0
      %1033 = vmatpush1.msra.mxu0 0.0
      %1034 = vmatprep.subr.mxu0 0.0
      %1035 = vmatpush1.msra.mxu0 0.0
      %1036 = vmatprep.subr.mxu0 0.0
      %1037 = vmatpush1.msra.mxu0 0.0
      %1038 = vmatprep.subr.mxu0 0.0
      %1039 = vmatpush1.msra.mxu0 0.0
      %1040 = vmatprep.subr.mxu0 0.0
      %1041 = vmatpush1.msra.mxu0 0.0
      %1042 = vmatprep.subr.mxu0 0.0
      %1043 = vmatpush1.msra.mxu0 0.0
      %1044 = vmatprep.subr.mxu0 0.0
      %1045 = vmatpush1.msra.mxu0 0.0
      %1046 = vmatprep.subr.mxu0 0.0
      %1047 = vmatpush1.msra.mxu0 0.0
      %1048 = vmatprep.subr.mxu0 0.0
      %1049 = vmatpush1.msra.mxu0 0.0
      %1050 = vmatprep.subr.mxu0 0.0
      %1051 = vmatpush1.msra.mxu0 0.0
      %1052 = vmatprep.subr.mxu0 0.0
      %1053 = vmatpush1.msra.mxu0 0.0
      %1054 = vmatprep.subr.mxu0 0.0
      %1055 = vmatpush1.msra.mxu0 0.0
      %1056 = vmatprep.subr.mxu0 0.0
      %1057 = vmatpush1.msra.mxu0 0.0
      %1058 = vmatprep.subr.mxu0 0.0
      %1059 = vmatpush1.msra.mxu0 %v1023
      %1060 = vmatprep.subr.mxu0 0.0
      %1061 = vmatpush2.msra.mxu0 0.0
      %1062 = vmatprep.subr.mxu0 0.0
      %1063 = vmatpush2.msra.mxu0 0.0
      %1064 = vmatprep.subr.mxu0 0.0
      %1065 = vmatpush2.msra.mxu0 0.0
      %1066 = vmatprep.subr.mxu0 0.0
      %1067 = vmatpush2.msra.mxu0 0.0
      %1068 = vmatprep.subr.mxu0 0.0
      %1069 = vmatpush2.msra.mxu0 0.0
      %1070 = vmatprep.subr.mxu0 0.0
      %1071 = vmatpush2.msra.mxu0 0.0
      %1072 = vmatprep.subr.mxu0 0.0
      %1073 = vmatpush2.msra.mxu0 0.0
      %1074 = vmatprep.subr.mxu0 0.0
      %1075 = vmatpush2.msra.mxu0 0.0
      %1076 = vmatprep.subr.mxu0 0.0
      %1077 = vmatpush2.msra.mxu0 0.0
      %1078 = vmatprep.subr.mxu0 0.0
      %1079 = vmatpush2.msra.mxu0 0.0
      %1080 = vmatprep.subr.mxu0 0.0
      %1081 = vmatpush2.msra.mxu0 0.0
      %1082 = vmatprep.subr.mxu0 0.0
      %1083 = vmatpush2.msra.mxu0 0.0
      %1084 = vmatprep.subr.mxu0 0.0
      %1085 = vmatpush2.msra.mxu0 0.0
      %1086 = vmatprep.subr.mxu0 0.0
      %1087 = vmatpush2.msra.mxu0 0.0
      %1088 = vmatprep.subr.mxu0 0.0
      %1089 = vmatpush2.msra.mxu0 0.0
      %1090 = vmatprep.subr.mxu0 0.0
      %1091 = vmatpush2.msra.mxu0 0.0
      %1092 = vmatprep.mubr.f32.mxu0 0.0
      %1093 = vmatmul.mubr.f32.gmra.mxu0 %v1026
      %v1094 = vpop.f32.mrf.mxu0
      %v1095 = vadd.f32 0.0, %v1094
      %v1096 = vpop.f32.mrf.mxu0
      %1097 = vdwg.mxu0
      %1098 = vrot.lane.b32.xlu0 %v597, 104
      %v1099 = vpop.permute.xlu0 %1098
      %1100 = vrot.lane.b32.xlu0 %v597, 72
      %v1101 = vpop.permute.xlu0 %1100
      %v1102 = vsel %vm603, %v1099, 0
      %v1104 = vsel %vm603, %v1101, 0
      %1106 = vmatprep.subr.mxu0 0.0
      %1107 = vmatpush1.xpose.msra.mxu0 0.0
      %1108 = vmatprep.subr.mxu0 0.0
      %1109 = vmatpush1.xpose.msra.mxu0 0.0
      %1110 = vmatprep.subr.mxu0 0.0
      %1111 = vmatpush1.xpose.msra.mxu0 0.0
      %1112 = vmatprep.subr.mxu0 0.0
      %1113 = vmatpush1.xpose.msra.mxu0 0.0
      %1114 = vmatprep.subr.mxu0 0.0
      %1115 = vmatpush1.xpose.msra.mxu0 0.0
      %1116 = vmatprep.subr.mxu0 0.0
      %1117 = vmatpush1.xpose.msra.mxu0 0.0
      %1118 = vmatprep.subr.mxu0 0.0
      %1119 = vmatpush1.xpose.msra.mxu0 0.0
      %1120 = vmatprep.subr.mxu0 0.0
      %1121 = vmatpush1.xpose.msra.mxu0 0.0
      %1122 = vmatprep.subr.mxu0 0.0
      %1123 = vmatpush1.xpose.msra.mxu0 0.0
      %1124 = vmatprep.subr.mxu0 0.0
      %1125 = vmatpush1.xpose.msra.mxu0 0.0
      %1126 = vmatprep.subr.mxu0 0.0
      %1127 = vmatpush1.xpose.msra.mxu0 0.0
      %1128 = vmatprep.subr.mxu0 0.0
      %1129 = vmatpush1.xpose.msra.mxu0 0.0
      %1130 = vmatprep.subr.mxu0 0.0
      %1131 = vmatpush1.xpose.msra.mxu0 0.0
      %1132 = vmatprep.subr.mxu0 0.0
      %1133 = vmatpush1.xpose.msra.mxu0 0.0
      %1134 = vmatprep.subr.mxu0 0.0
      %1135 = vmatpush1.xpose.msra.mxu0 0.0
      %1136 = vmatprep.subr.mxu0 0.0
      %1137 = vmatpush1.xpose.msra.mxu0 %v1104
      %1138 = vmatprep.subr.mxu0 0.0
      %1139 = vmatpush2.xpose.msra.mxu0 0.0
      %1140 = vmatprep.subr.mxu0 0.0
      %1141 = vmatpush2.xpose.msra.mxu0 0.0
      %1142 = vmatprep.subr.mxu0 0.0
      %1143 = vmatpush2.xpose.msra.mxu0 0.0
      %1144 = vmatprep.subr.mxu0 0.0
      %1145 = vmatpush2.xpose.msra.mxu0 0.0
      %1146 = vmatprep.subr.mxu0 0.0
      %1147 = vmatpush2.xpose.msra.mxu0 0.0
      %1148 = vmatprep.subr.mxu0 0.0
      %1149 = vmatpush2.xpose.msra.mxu0 0.0
      %1150 = vmatprep.subr.mxu0 0.0
      %1151 = vmatpush2.xpose.msra.mxu0 0.0
      %1152 = vmatprep.subr.mxu0 0.0
      %1153 = vmatpush2.xpose.msra.mxu0 0.0
      %1154 = vmatprep.subr.mxu0 0.0
      %1155 = vmatpush2.xpose.msra.mxu0 0.0
      %1156 = vmatprep.subr.mxu0 0.0
      %1157 = vmatpush2.xpose.msra.mxu0 0.0
      %1158 = vmatprep.subr.mxu0 0.0
      %1159 = vmatpush2.xpose.msra.mxu0 0.0
      %1160 = vmatprep.subr.mxu0 0.0
      %1161 = vmatpush2.xpose.msra.mxu0 0.0
      %1162 = vmatprep.subr.mxu0 0.0
      %1163 = vmatpush2.xpose.msra.mxu0 0.0
      %1164 = vmatprep.subr.mxu0 0.0
      %1165 = vmatpush2.xpose.msra.mxu0 0.0
      %1166 = vmatprep.subr.mxu0 0.0
      %1167 = vmatpush2.xpose.msra.mxu0 0.0
      %1168 = vmatprep.subr.mxu0 0.0
      %1169 = vmatpush2.xpose.msra.mxu0 0.0
      %1170 = vmatprep.mubr.f32.mxu0 0.0
      %1171 = vmatmul.mubr.f32.gmra.mxu0 %v1102
      %v1172 = vpop.f32.mrf.mxu0
      %v1173 = vadd.f32 0.0, %v1172
      %v1174 = vpop.f32.mrf.mxu0
      %1175 = vdwg.mxu0
      %v1176 = vmul.f32 %v1173, 0.35355338
      %v1177 = vsel %vm603, %v1176, -inf
      %1178 = vmax.xlane.f32.xlu0 %v1177
      %v1179 = vpop.xlane.xlu0 %1178
      %v1180 = vsub.f32 %v1176, %v1179
      %v1181 = vmul.f32 %v1180, 1.442695
      %v1182 = vpow.pop %v1181
      %v1183 = vsel %vm603, %v1182, 0.0
      %1184 = vadd.xlane.f32.xlu0 %v1183
      %v1185 = vpop.xlane.xlu0 %1184
      %v1186 = vrcp.pop %v1185
      %v1187 = vmul.f32 %v1182, %v1186
      %1188 = vrot.lane.b32.xlu0 %v597, 40
      %v1189 = vpop.permute.xlu0 %1188
      %v1192 = vsel %vm603, %v1187, 0
      %1194 = vmatprep.subr.mxu0 0.0
      %1195 = vmatpush1.msra.mxu0 0.0
      %1196 = vmatprep.subr.mxu0 0.0
      %1197 = vmatpush1.msra.mxu0 0.0
      %1198 = vmatprep.subr.mxu0 0.0
      %1199 = vmatpush1.msra.mxu0 0.0
      %1200 = vmatprep.subr.mxu0 0.0
      %1201 = vmatpush1.msra.mxu0 0.0
      %1202 = vmatprep.subr.mxu0 0.0
      %1203 = vmatpush1.msra.mxu0 0.0
      %1204 = vmatprep.subr.mxu0 0.0
      %1205 = vmatpush1.msra.mxu0 0.0
      %1206 = vmatprep.subr.mxu0 0.0
      %1207 = vmatpush1.msra.mxu0 0.0
      %1208 = vmatprep.subr.mxu0 0.0
      %1209 = vmatpush1.msra.mxu0 0.0
      %1210 = vmatprep.subr.mxu0 0.0
      %1211 = vmatpush1.msra.mxu0 0.0
      %1212 = vmatprep.subr.mxu0 0.0
      %1213 = vmatpush1.msra.mxu0 0.0
      %1214 = vmatprep.subr.mxu0 0.0
      %1215 = vmatpush1.msra.mxu0 0.0
      %1216 = vmatprep.subr.mxu0 0.0
      %1217 = vmatpush1.msra.mxu0 0.0
      %1218 = vmatprep.subr.mxu0 0.0
      %1219 = vmatpush1.msra.mxu0 0.0
      %1220 = vmatprep.subr.mxu0 0.0
      %1221 = vmatpush1.msra.mxu0 0.0
      %1222 = vmatprep.subr.mxu0 0.0
      %1223 = vmatpush1.msra.mxu0 0.0
      %1224 = vmatprep.subr.mxu0 0.0
      %1225 = vmatpush1.msra.mxu0 %v1189
      %1226 = vmatprep.subr.mxu0 0.0
      %1227 = vmatpush2.msra.mxu0 0.0
      %1228 = vmatprep.subr.mxu0 0.0
      %1229 = vmatpush2.msra.mxu0 0.0
      %1230 = vmatprep.subr.mxu0 0.0
      %1231 = vmatpush2.msra.mxu0 0.0
      %1232 = vmatprep.subr.mxu0 0.0
      %1233 = vmatpush2.msra.mxu0 0.0
      %1234 = vmatprep.subr.mxu0 0.0
      %1235 = vmatpush2.msra.mxu0 0.0
      %1236 = vmatprep.subr.mxu0 0.0
      %1237 = vmatpush2.msra.mxu0 0.0
      %1238 = vmatprep.subr.mxu0 0.0
      %1239 = vmatpush2.msra.mxu0 0.0
      %1240 = vmatprep.subr.mxu0 0.0
      %1241 = vmatpush2.msra.mxu0 0.0
      %1242 = vmatprep.subr.mxu0 0.0
      %1243 = vmatpush2.msra.mxu0 0.0
      %1244 = vmatprep.subr.mxu0 0.0
      %1245 = vmatpush2.msra.mxu0 0.0
      %1246 = vmatprep.subr.mxu0 0.0
      %1247 = vmatpush2.msra.mxu0 0.0
      %1248 = vmatprep.subr.mxu0 0.0
      %1249 = vmatpush2.msra.mxu0 0.0
      %1250 = vmatprep.subr.mxu0 0.0
      %1251 = vmatpush2.msra.mxu0 0.0
      %1252 = vmatprep.subr.mxu0 0.0
      %1253 = vmatpush2.msra.mxu0 0.0
      %1254 = vmatprep.subr.mxu0 0.0
      %1255 = vmatpush2.msra.mxu0 0.0
      %1256 = vmatprep.subr.mxu0 0.0
      %1257 = vmatpush2.msra.mxu0 0.0
      %1258 = vmatprep.mubr.f32.mxu0 0.0
      %1259 = vmatmul.mubr.f32.gmra.mxu0 %v1192
      %v1260 = vpop.f32.mrf.mxu0
      %v1261 = vadd.f32 0.0, %v1260
      %v1262 = vpop.f32.mrf.mxu0
      %1263 = vdwg.mxu0
      %1265 = vrot.lane.b32.xlu0 %v929, 8
      %v1266 = vpop.permute.xlu0 %1265
      %1269 = vrot.lane.b32.xlu0 %v1095, 16
      %v1270 = vpop.permute.xlu0 %1269
      %1273 = vrot.lane.b32.xlu0 %v1261, 24
      %v1274 = vpop.permute.xlu0 %1273
      %v1276 = vsel %vm603, %v763, %v1266
      %vm1277 = vcmask 130048
      %v1278 = vsel %vm1277, %v1276, %v1270
      %vm1279 = vcmask 195584
      %v1280 = vsel %vm1279, %v1278, %v1274
      %v1281 = vld [vmem:[%s4] sm:$0xff]
      %v1282 = vld [vmem:[%s4 + $0x8] sm:$0xff]
      %v1283 = vld [vmem:[%s4 + $0x10] sm:$0xff]
      %v1284 = vld [vmem:[%s4 + $0x18] sm:$0xff]
      %v1285 = vld [vmem:[%s5] sm:$0x1]
      %v1287 = vlaneseq
      %v1288 = vshrl.u32 %v1287, 7
      %v1289 = vsub.s32 0, %v1288
      %v1290 = vrot.slane %v1285, %v1289
      %v1293 = vsel %vm526, %v1280, 0
      %1295 = vmatprep.subr.mxu0 0.0
      %1296 = vmatpush1.msra.mxu0 0.0
      %1297 = vmatprep.subr.mxu0 0.0
      %1298 = vmatpush1.msra.mxu0 0.0
      %1299 = vmatprep.subr.mxu0 0.0
      %1300 = vmatpush1.msra.mxu0 0.0
      %1301 = vmatprep.subr.mxu0 0.0
      %1302 = vmatpush1.msra.mxu0 0.0
      %1303 = vmatprep.subr.mxu0 0.0
      %1304 = vmatpush1.msra.mxu0 0.0
      %1305 = vmatprep.subr.mxu0 0.0
      %1306 = vmatpush1.msra.mxu0 0.0
      %1307 = vmatprep.subr.mxu0 0.0
      %1308 = vmatpush1.msra.mxu0 0.0
      %1309 = vmatprep.subr.mxu0 0.0
      %1310 = vmatpush1.msra.mxu0 0.0
      %1311 = vmatprep.subr.mxu0 0.0
      %1312 = vmatpush1.msra.mxu0 0.0
      %1313 = vmatprep.subr.mxu0 0.0
      %1314 = vmatpush1.msra.mxu0 0.0
      %1315 = vmatprep.subr.mxu0 0.0
      %1316 = vmatpush1.msra.mxu0 0.0
      %1317 = vmatprep.subr.mxu0 0.0
      %1318 = vmatpush1.msra.mxu0 0.0
      %1319 = vmatprep.subr.mxu0 0.0
      %1320 = vmatpush1.msra.mxu0 %v1284
      %1321 = vmatprep.subr.mxu0 0.0
      %1322 = vmatpush1.msra.mxu0 %v1283
      %1323 = vmatprep.subr.mxu0 0.0
      %1324 = vmatpush1.msra.mxu0 %v1282
      %1325 = vmatprep.subr.mxu0 0.0
      %1326 = vmatpush1.msra.mxu0 %v1281
      %1327 = vmatprep.subr.mxu0 0.0
      %1328 = vmatpush2.msra.mxu0 0.0
      %1329 = vmatprep.subr.mxu0 0.0
      %1330 = vmatpush2.msra.mxu0 0.0
      %1331 = vmatprep.subr.mxu0 0.0
      %1332 = vmatpush2.msra.mxu0 0.0
      %1333 = vmatprep.subr.mxu0 0.0
      %1334 = vmatpush2.msra.mxu0 0.0
      %1335 = vmatprep.subr.mxu0 0.0
      %1336 = vmatpush2.msra.mxu0 0.0
      %1337 = vmatprep.subr.mxu0 0.0
      %1338 = vmatpush2.msra.mxu0 0.0
      %1339 = vmatprep.subr.mxu0 0.0
      %1340 = vmatpush2.msra.mxu0 0.0
      %1341 = vmatprep.subr.mxu0 0.0
      %1342 = vmatpush2.msra.mxu0 0.0
      %1343 = vmatprep.subr.mxu0 0.0
      %1344 = vmatpush2.msra.mxu0 0.0
      %1345 = vmatprep.subr.mxu0 0.0
      %1346 = vmatpush2.msra.mxu0 0.0
      %1347 = vmatprep.subr.mxu0 0.0
      %1348 = vmatpush2.msra.mxu0 0.0
      %1349 = vmatprep.subr.mxu0 0.0
      %1350 = vmatpush2.msra.mxu0 0.0
      %1351 = vmatprep.subr.mxu0 0.0
      %1352 = vmatpush2.msra.mxu0 0.0
      %1353 = vmatprep.subr.mxu0 0.0
      %1354 = vmatpush2.msra.mxu0 0.0
      %1355 = vmatprep.subr.mxu0 0.0
      %1356 = vmatpush2.msra.mxu0 0.0
      %1357 = vmatprep.subr.mxu0 0.0
      %1358 = vmatpush2.msra.mxu0 0.0
      %1359 = vmatprep.mubr.f32.mxu0 0.0
      %1360 = vmatmul.mubr.f32.gmra.mxu0 %v1293
      %v1361 = vpop.f32.mrf.mxu0
      %v1362 = vadd.f32 %v1290, %v1361
      %v1363 = vpop.f32.mrf.mxu0
      %1364 = vdwg.mxu0
      %v1365 = vstv %s511
      %v1366 = vmul.f32 %v1365, %v1362
      %v1367 = vadd.f32 %v512, %v1366
      %v1368 = vld [vmem:[%s6] sm:$0xff]
      %v1369 = vld [vmem:[%s6 + $0x8] sm:$0xff]
      %v1370 = vld [vmem:[%s6 + $0x10] sm:$0xff]
      %v1371 = vld [vmem:[%s6 + $0x18] sm:$0xff]
      %v1372 = vld [vmem:[%s7] sm:$0x1]
      %v1374 = vlaneseq
      %v1375 = vshrl.u32 %v1374, 7
      %v1376 = vsub.s32 0, %v1375
      %v1377 = vrot.slane %v1372, %v1376
      %v1380 = vsel %vm526, %v1367, 0
      %1382 = vmatprep.subr.mxu0 0.0
      %1383 = vmatpush1.msra.mxu0 0.0
      %1384 = vmatprep.subr.mxu0 0.0
      %1385 = vmatpush1.msra.mxu0 0.0
      %1386 = vmatprep.subr.mxu0 0.0
      %1387 = vmatpush1.msra.mxu0 0.0
      %1388 = vmatprep.subr.mxu0 0.0
      %1389 = vmatpush1.msra.mxu0 0.0
      %1390 = vmatprep.subr.mxu0 0.0
      %1391 = vmatpush1.msra.mxu0 0.0
      %1392 = vmatprep.subr.mxu0 0.0
      %1393 = vmatpush1.msra.mxu0 0.0
      %1394 = vmatprep.subr.mxu0 0.0
      %1395 = vmatpush1.msra.mxu0 0.0
      %1396 = vmatprep.subr.mxu0 0.0
      %1397 = vmatpush1.msra.mxu0 0.0
      %1398 = vmatprep.subr.mxu0 0.0
      %1399 = vmatpush1.msra.mxu0 0.0
      %1400 = vmatprep.subr.mxu0 0.0
      %1401 = vmatpush1.msra.mxu0 0.0
      %1402 = vmatprep.subr.mxu0 0.0
      %1403 = vmatpush1.msra.mxu0 0.0
      %1404 = vmatprep.subr.mxu0 0.0
      %1405 = vmatpush1.msra.mxu0 0.0
      %1406 = vmatprep.subr.mxu0 0.0
      %1407 = vmatpush1.msra.mxu0 %v1371
      %1408 = vmatprep.subr.mxu0 0.0
      %1409 = vmatpush1.msra.mxu0 %v1370
      %1410 = vmatprep.subr.mxu0 0.0
      %1411 = vmatpush1.msra.mxu0 %v1369
      %1412 = vmatprep.subr.mxu0 0.0
      %1413 = vmatpush1.msra.mxu0 %v1368
      %1414 = vmatprep.subr.mxu0 0.0
      %1415 = vmatpush2.msra.mxu0 0.0
      %1416 = vmatprep.subr.mxu0 0.0
      %1417 = vmatpush2.msra.mxu0 0.0
      %1418 = vmatprep.subr.mxu0 0.0
      %1419 = vmatpush2.msra.mxu0 0.0
      %1420 = vmatprep.subr.mxu0 0.0
      %1421 = vmatpush2.msra.mxu0 0.0
      %1422 = vmatprep.subr.mxu0 0.0
      %1423 = vmatpush2.msra.mxu0 0.0
      %1424 = vmatprep.subr.mxu0 0.0
      %1425 = vmatpush2.msra.mxu0 0.0
      %1426 = vmatprep.subr.mxu0 0.0
      %1427 = vmatpush2.msra.mxu0 0.0
      %1428 = vmatprep.subr.mxu0 0.0
      %1429 = vmatpush2.msra.mxu0 0.0
      %1430 = vmatprep.subr.mxu0 0.0
      %1431 = vmatpush2.msra.mxu0 0.0
      %1432 = vmatprep.subr.mxu0 0.0
      %1433 = vmatpush2.msra.mxu0 0.0
      %1434 = vmatprep.subr.mxu0 0.0
      %1435 = vmatpush2.msra.mxu0 0.0
      %1436 = vmatprep.subr.mxu0 0.0
      %1437 = vmatpush2.msra.mxu0 0.0
      %1438 = vmatprep.subr.mxu0 0.0
      %1439 = vmatpush2.msra.mxu0 0.0
      %1440 = vmatprep.subr.mxu0 0.0
      %1441 = vmatpush2.msra.mxu0 0.0
      %1442 = vmatprep.subr.mxu0 0.0
      %1443 = vmatpush2.msra.mxu0 0.0
      %1444 = vmatprep.subr.mxu0 0.0
      %1445 = vmatpush2.msra.mxu0 0.0
      %1446 = vmatprep.mubr.f32.mxu0 0.0
      %1447 = vmatmul.mubr.f32.gmra.mxu0 %v1380
      %v1448 = vpop.f32.mrf.mxu0
      %v1449 = vadd.f32 %v1377, %v1448
      %v1450 = vpop.f32.mrf.mxu0
      %1451 = vdwg.mxu0
      %1456 = vrot.lane.b32.xlu0 %v1368, 96
      %v1457 = vpop.permute.xlu0 %1456
      %1458 = vrot.lane.b32.xlu0 %v1369, 96
      %v1459 = vpop.permute.xlu0 %1458
      %1460 = vrot.lane.b32.xlu0 %v1370, 96
      %v1461 = vpop.permute.xlu0 %1460
      %1462 = vrot.lane.b32.xlu0 %v1371, 96
      %v1463 = vpop.permute.xlu0 %1462
      %1468 = vrot.lane.b32.xlu0 %v1377, 96
      %v1469 = vpop.permute.xlu0 %1468
      %v1472 = vsel %vm526, %v513, 0
      %v1475 = vsel %vm526, %v514, 0
      %1477 = vmatprep.subr.mxu0 0.0
      %1478 = vmatpush1.msra.mxu0 0.0
      %1479 = vmatprep.subr.mxu0 0.0
      %1480 = vmatpush1.msra.mxu0 0.0
      %1481 = vmatprep.subr.mxu0 0.0
      %1482 = vmatpush1.msra.mxu0 0.0
      %1483 = vmatprep.subr.mxu0 0.0
      %1484 = vmatpush1.msra.mxu0 0.0
      %1485 = vmatprep.subr.mxu0 0.0
      %1486 = vmatpush1.msra.mxu0 0.0
      %1487 = vmatprep.subr.mxu0 0.0
      %1488 = vmatpush1.msra.mxu0 0.0
      %1489 = vmatprep.subr.mxu0 0.0
      %1490 = vmatpush1.msra.mxu0 0.0
      %1491 = vmatprep.subr.mxu0 0.0
      %1492 = vmatpush1.msra.mxu0 0.0
      %1493 = vmatprep.subr.mxu0 0.0
      %1494 = vmatpush1.msra.mxu0 0.0
      %1495 = vmatprep.subr.mxu0 0.0
      %1496 = vmatpush1.msra.mxu0 0.0
      %1497 = vmatprep.subr.mxu0 0.0
      %1498 = vmatpush1.msra.mxu0 0.0
      %1499 = vmatprep.subr.mxu0 0.0
      %1500 = vmatpush1.msra.mxu0 0.0
      %1501 = vmatprep.subr.mxu0 0.0
      %1502 = vmatpush1.msra.mxu0 %v1463
      %1503 = vmatprep.subr.mxu0 0.0
      %1504 = vmatpush1.msra.mxu0 %v1461
      %1505 = vmatprep.subr.mxu0 0.0
      %1506 = vmatpush1.msra.mxu0 %v1459
      %1507 = vmatprep.subr.mxu0 0.0
      %1508 = vmatpush1.msra.mxu0 %v1457
      %1509 = vmatprep.subr.mxu0 0.0
      %1510 = vmatpush2.msra.mxu0 0.0
      %1511 = vmatprep.subr.mxu0 0.0
      %1512 = vmatpush2.msra.mxu0 0.0
      %1513 = vmatprep.subr.mxu0 0.0
      %1514 = vmatpush2.msra.mxu0 0.0
      %1515 = vmatprep.subr.mxu0 0.0
      %1516 = vmatpush2.msra.mxu0 0.0
      %1517 = vmatprep.subr.mxu0 0.0
      %1518 = vmatpush2.msra.mxu0 0.0
      %1519 = vmatprep.subr.mxu0 0.0
      %1520 = vmatpush2.msra.mxu0 0.0
      %1521 = vmatprep.subr.mxu0 0.0
      %1522 = vmatpush2.msra.mxu0 0.0
      %1523 = vmatprep.subr.mxu0 0.0
      %1524 = vmatpush2.msra.mxu0 0.0
      %1525 = vmatprep.subr.mxu0 0.0
      %1526 = vmatpush2.msra.mxu0 0.0
      %1527 = vmatprep.subr.mxu0 0.0
      %1528 = vmatpush2.msra.mxu0 0.0
      %1529 = vmatprep.subr.mxu0 0.0
      %1530 = vmatpush2.msra.mxu0 0.0
      %1531 = vmatprep.subr.mxu0 0.0
      %1532 = vmatpush2.msra.mxu0 0.0
      %1533 = vmatprep.subr.mxu0 0.0
      %1534 = vmatpush2.msra.mxu0 0.0
      %1535 = vmatprep.subr.mxu0 0.0
      %1536 = vmatpush2.msra.mxu0 0.0
      %1537 = vmatprep.subr.mxu0 0.0
      %1538 = vmatpush2.msra.mxu0 0.0
      %1539 = vmatprep.subr.mxu0 0.0
      %1540 = vmatpush2.msra.mxu0 0.0
      %1541 = vmatprep.mubr.f32.mxu0 0.0
      %1542 = vmatmul.mubr.f32.gmra.mxu0 %v1472
      %v1543 = vpop.f32.mrf.mxu0
      %v1544 = vadd.f32 %v1469, %v1543
      %v1545 = vpop.f32.mrf.mxu0
      %1546 = vmatprep.mubr.f32.mxu0 0.0
      %1547 = vmatmul.mubr.f32.gmra.mxu0 %v1475
      %v1548 = vpop.f32.mrf.mxu0
      %v1549 = vadd.f32 %v1469, %v1548
      %v1550 = vpop.f32.mrf.mxu0
      %1551 = vdwg.mxu0
      %v1553 = vsel %vm603, %v1449, 0
      %v1556 = vsel %vm603, %v1544, 0
      %v1559 = vsel %vm603, %v1549, 0
      %1561 = vmatprep.subr.mxu0 0.0
      %1562 = vmatpush1.xpose.msra.mxu0 0.0
      %1563 = vmatprep.subr.mxu0 0.0
      %1564 = vmatpush1.xpose.msra.mxu0 0.0
      %1565 = vmatprep.subr.mxu0 0.0
      %1566 = vmatpush1.xpose.msra.mxu0 0.0
      %1567 = vmatprep.subr.mxu0 0.0
      %1568 = vmatpush1.xpose.msra.mxu0 0.0
      %1569 = vmatprep.subr.mxu0 0.0
      %1570 = vmatpush1.xpose.msra.mxu0 0.0
      %1571 = vmatprep.subr.mxu0 0.0
      %1572 = vmatpush1.xpose.msra.mxu0 0.0
      %1573 = vmatprep.subr.mxu0 0.0
      %1574 = vmatpush1.xpose.msra.mxu0 0.0
      %1575 = vmatprep.subr.mxu0 0.0
      %1576 = vmatpush1.xpose.msra.mxu0 0.0
      %1577 = vmatprep.subr.mxu0 0.0
      %1578 = vmatpush1.xpose.msra.mxu0 0.0
      %1579 = vmatprep.subr.mxu0 0.0
      %1580 = vmatpush1.xpose.msra.mxu0 0.0
      %1581 = vmatprep.subr.mxu0 0.0
      %1582 = vmatpush1.xpose.msra.mxu0 0.0
      %1583 = vmatprep.subr.mxu0 0.0
      %1584 = vmatpush1.xpose.msra.mxu0 0.0
      %1585 = vmatprep.subr.mxu0 0.0
      %1586 = vmatpush1.xpose.msra.mxu0 0.0
      %1587 = vmatprep.subr.mxu0 0.0
      %1588 = vmatpush1.xpose.msra.mxu0 0.0
      %1589 = vmatprep.subr.mxu0 0.0
      %1590 = vmatpush1.xpose.msra.mxu0 %v1559
      %1591 = vmatprep.subr.mxu0 0.0
      %1592 = vmatpush1.xpose.msra.mxu0 %v1556
      %1593 = vmatprep.subr.mxu0 0.0
      %1594 = vmatpush2.xpose.msra.mxu0 0.0
      %1595 = vmatprep.subr.mxu0 0.0
      %1596 = vmatpush2.xpose.msra.mxu0 0.0
      %1597 = vmatprep.subr.mxu0 0.0
      %1598 = vmatpush2.xpose.msra.mxu0 0.0
      %1599 = vmatprep.subr.mxu0 0.0
      %1600 = vmatpush2.xpose.msra.mxu0 0.0
      %1601 = vmatprep.subr.mxu0 0.0
      %1602 = vmatpush2.xpose.msra.mxu0 0.0
      %1603 = vmatprep.subr.mxu0 0.0
      %1604 = vmatpush2.xpose.msra.mxu0 0.0
      %1605 = vmatprep.subr.mxu0 0.0
      %1606 = vmatpush2.xpose.msra.mxu0 0.0
      %1607 = vmatprep.subr.mxu0 0.0
      %1608 = vmatpush2.xpose.msra.mxu0 0.0
      %1609 = vmatprep.subr.mxu0 0.0
      %1610 = vmatpush2.xpose.msra.mxu0 0.0
      %1611 = vmatprep.subr.mxu0 0.0
      %1612 = vmatpush2.xpose.msra.mxu0 0.0
      %1613 = vmatprep.subr.mxu0 0.0
      %1614 = vmatpush2.xpose.msra.mxu0 0.0
      %1615 = vmatprep.subr.mxu0 0.0
      %1616 = vmatpush2.xpose.msra.mxu0 0.0
      %1617 = vmatprep.subr.mxu0 0.0
      %1618 = vmatpush2.xpose.msra.mxu0 0.0
      %1619 = vmatprep.subr.mxu0 0.0
      %1620 = vmatpush2.xpose.msra.mxu0 0.0
      %1621 = vmatprep.subr.mxu0 0.0
      %1622 = vmatpush2.xpose.msra.mxu0 0.0
      %1623 = vmatprep.subr.mxu0 0.0
      %1624 = vmatpush2.xpose.msra.mxu0 0.0
      %1625 = vmatprep.mubr.f32.mxu0 0.0
      %1626 = vmatmul.mubr.f32.gmra.mxu0 %v1553
      %v1627 = vpop.f32.mrf.mxu0
      %v1628 = vadd.f32 0.0, %v1627
      %v1629 = vpop.f32.mrf.mxu0
      %1630 = vdwg.mxu0
      %v1631 = vmul.f32 %v1628, 0.35355338
      %v1632 = vsel %vm1277, %v1631, -inf
      %1633 = vmax.xlane.f32.xlu0 %v1632
      %v1634 = vpop.xlane.xlu0 %1633
      %v1635 = vsub.f32 %v1631, %v1634
      %v1636 = vmul.f32 %v1635, 1.442695
      %v1637 = vpow.pop %v1636
      %v1638 = vsel %vm1277, %v1637, 0.0
      %1639 = vadd.xlane.f32.xlu0 %v1638
      %v1640 = vpop.xlane.xlu0 %1639
      %v1641 = vrcp.pop %v1640
      %v1642 = vmul.f32 %v1637, %v1641
      %1643 = vrot.lane.b32.xlu0 %v1544, 96
      %v1644 = vpop.permute.xlu0 %1643
      %1645 = vrot.lane.b32.xlu0 %v1549, 96
      %v1646 = vpop.permute.xlu0 %1645
      %v1650 = vsel %vm1277, %v1642, 0
      %1652 = vmatprep.subr.mxu0 0.0
      %1653 = vmatpush1.msra.mxu0 0.0
      %1654 = vmatprep.subr.mxu0 0.0
      %1655 = vmatpush1.msra.mxu0 0.0
      %1656 = vmatprep.subr.mxu0 0.0
      %1657 = vmatpush1.msra.mxu0 0.0
      %1658 = vmatprep.subr.mxu0 0.0
      %1659 = vmatpush1.msra.mxu0 0.0
      %1660 = vmatprep.subr.mxu0 0.0
      %1661 = vmatpush1.msra.mxu0 0.0
      %1662 = vmatprep.subr.mxu0 0.0
      %1663 = vmatpush1.msra.mxu0 0.0
      %1664 = vmatprep.subr.mxu0 0.0
      %1665 = vmatpush1.msra.mxu0 0.0
      %1666 = vmatprep.subr.mxu0 0.0
      %1667 = vmatpush1.msra.mxu0 0.0
      %1668 = vmatprep.subr.mxu0 0.0
      %1669 = vmatpush1.msra.mxu0 0.0
      %1670 = vmatprep.subr.mxu0 0.0
      %1671 = vmatpush1.msra.mxu0 0.0
      %1672 = vmatprep.subr.mxu0 0.0
      %1673 = vmatpush1.msra.mxu0 0.0
      %1674 = vmatprep.subr.mxu0 0.0
      %1675 = vmatpush1.msra.mxu0 0.0
      %1676 = vmatprep.subr.mxu0 0.0
      %1677 = vmatpush1.msra.mxu0 0.0
      %1678 = vmatprep.subr.mxu0 0.0
      %1679 = vmatpush1.msra.mxu0 0.0
      %1680 = vmatprep.subr.mxu0 0.0
      %1681 = vmatpush1.msra.mxu0 %v1646
      %1682 = vmatprep.subr.mxu0 0.0
      %1683 = vmatpush1.msra.mxu0 %v1644
      %1684 = vmatprep.subr.mxu0 0.0
      %1685 = vmatpush2.msra.mxu0 0.0
      %1686 = vmatprep.subr.mxu0 0.0
      %1687 = vmatpush2.msra.mxu0 0.0
      %1688 = vmatprep.subr.mxu0 0.0
      %1689 = vmatpush2.msra.mxu0 0.0
      %1690 = vmatprep.subr.mxu0 0.0
      %1691 = vmatpush2.msra.mxu0 0.0
      %1692 = vmatprep.subr.mxu0 0.0
      %1693 = vmatpush2.msra.mxu0 0.0
      %1694 = vmatprep.subr.mxu0 0.0
      %1695 = vmatpush2.msra.mxu0 0.0
      %1696 = vmatprep.subr.mxu0 0.0
      %1697 = vmatpush2.msra.mxu0 0.0
      %1698 = vmatprep.subr.mxu0 0.0
      %1699 = vmatpush2.msra.mxu0 0.0
      %1700 = vmatprep.subr.mxu0 0.0
      %1701 = vmatpush2.msra.mxu0 0.0
      %1702 = vmatprep.subr.mxu0 0.0
      %1703 = vmatpush2.msra.mxu0 0.0
      %1704 = vmatprep.subr.mxu0 0.0
      %1705 = vmatpush2.msra.mxu0 0.0
      %1706 = vmatprep.subr.mxu0 0.0
      %1707 = vmatpush2.msra.mxu0 0.0
      %1708 = vmatprep.subr.mxu0 0.0
      %1709 = vmatpush2.msra.mxu0 0.0
      %1710 = vmatprep.subr.mxu0 0.0
      %1711 = vmatpush2.msra.mxu0 0.0
      %1712 = vmatprep.subr.mxu0 0.0
      %1713 = vmatpush2.msra.mxu0 0.0
      %1714 = vmatprep.subr.mxu0 0.0
      %1715 = vmatpush2.msra.mxu0 0.0
      %1716 = vmatprep.mubr.f32.mxu0 0.0
      %1717 = vmatmul.mubr.f32.gmra.mxu0 %v1650
      %v1718 = vpop.f32.mrf.mxu0
      %v1719 = vadd.f32 0.0, %v1718
      %v1720 = vpop.f32.mrf.mxu0
      %1721 = vdwg.mxu0
      %1722 = vrot.lane.b32.xlu0 %v1449, 120
      %v1723 = vpop.permute.xlu0 %1722
      %1724 = vrot.lane.b32.xlu0 %v1544, 120
      %v1725 = vpop.permute.xlu0 %1724
      %1726 = vrot.lane.b32.xlu0 %v1549, 120
      %v1727 = vpop.permute.xlu0 %1726
      %v1728 = vsel %vm603, %v1723, 0
      %v1730 = vsel %vm603, %v1725, 0
      %v1732 = vsel %vm603, %v1727, 0
      %1734 = vmatprep.subr.mxu0 0.0
      %1735 = vmatpush1.xpose.msra.mxu0 0.0
      %1736 = vmatprep.subr.mxu0 0.0
      %1737 = vmatpush1.xpose.msra.mxu0 0.0
      %1738 = vmatprep.subr.mxu0 0.0
      %1739 = vmatpush1.xpose.msra.mxu0 0.0
      %1740 = vmatprep.subr.mxu0 0.0
      %1741 = vmatpush1.xpose.msra.mxu0 0.0
      %1742 = vmatprep.subr.mxu0 0.0
      %1743 = vmatpush1.xpose.msra.mxu0 0.0
      %1744 = vmatprep.subr.mxu0 0.0
      %1745 = vmatpush1.xpose.msra.mxu0 0.0
      %1746 = vmatprep.subr.mxu0 0.0
      %1747 = vmatpush1.xpose.msra.mxu0 0.0
      %1748 = vmatprep.subr.mxu0 0.0
      %1749 = vmatpush1.xpose.msra.mxu0 0.0
      %1750 = vmatprep.subr.mxu0 0.0
      %1751 = vmatpush1.xpose.msra.mxu0 0.0
      %1752 = vmatprep.subr.mxu0 0.0
      %1753 = vmatpush1.xpose.msra.mxu0 0.0
      %1754 = vmatprep.subr.mxu0 0.0
      %1755 = vmatpush1.xpose.msra.mxu0 0.0
      %1756 = vmatprep.subr.mxu0 0.0
      %1757 = vmatpush1.xpose.msra.mxu0 0.0
      %1758 = vmatprep.subr.mxu0 0.0
      %1759 = vmatpush1.xpose.msra.mxu0 0.0
      %1760 = vmatprep.subr.mxu0 0.0
      %1761 = vmatpush1.xpose.msra.mxu0 0.0
      %1762 = vmatprep.subr.mxu0 0.0
      %1763 = vmatpush1.xpose.msra.mxu0 %v1732
      %1764 = vmatprep.subr.mxu0 0.0
      %1765 = vmatpush1.xpose.msra.mxu0 %v1730
      %1766 = vmatprep.subr.mxu0 0.0
      %1767 = vmatpush2.xpose.msra.mxu0 0.0
      %1768 = vmatprep.subr.mxu0 0.0
      %1769 = vmatpush2.xpose.msra.mxu0 0.0
      %1770 = vmatprep.subr.mxu0 0.0
      %1771 = vmatpush2.xpose.msra.mxu0 0.0
      %1772 = vmatprep.subr.mxu0 0.0
      %1773 = vmatpush2.xpose.msra.mxu0 0.0
      %1774 = vmatprep.subr.mxu0 0.0
      %1775 = vmatpush2.xpose.msra.mxu0 0.0
      %1776 = vmatprep.subr.mxu0 0.0
      %1777 = vmatpush2.xpose.msra.mxu0 0.0
      %1778 = vmatprep.subr.mxu0 0.0
      %1779 = vmatpush2.xpose.msra.mxu0 0.0
      %1780 = vmatprep.subr.mxu0 0.0
      %1781 = vmatpush2.xpose.msra.mxu0 0.0
      %1782 = vmatprep.subr.mxu0 0.0
      %1783 = vmatpush2.xpose.msra.mxu0 0.0
      %1784 = vmatprep.subr.mxu0 0.0
      %1785 = vmatpush2.xpose.msra.mxu0 0.0
      %1786 = vmatprep.subr.mxu0 0.0
      %1787 = vmatpush2.xpose.msra.mxu0 0.0
      %1788 = vmatprep.subr.mxu0 0.0
      %1789 = vmatpush2.xpose.msra.mxu0 0.0
      %1790 = vmatprep.subr.mxu0 0.0
      %1791 = vmatpush2.xpose.msra.mxu0 0.0
      %1792 = vmatprep.subr.mxu0 0.0
      %1793 = vmatpush2.xpose.msra.mxu0 0.0
      %1794 = vmatprep.subr.mxu0 0.0
      %1795 = vmatpush2.xpose.msra.mxu0 0.0
      %1796 = vmatprep.subr.mxu0 0.0
      %1797 = vmatpush2.xpose.msra.mxu0 0.0
      %1798 = vmatprep.mubr.f32.mxu0 0.0
      %1799 = vmatmul.mubr.f32.gmra.mxu0 %v1728
      %v1800 = vpop.f32.mrf.mxu0
      %v1801 = vadd.f32 0.0, %v1800
      %v1802 = vpop.f32.mrf.mxu0
      %1803 = vdwg.mxu0
      %v1804 = vmul.f32 %v1801, 0.35355338
      %v1805 = vsel %vm1277, %v1804, -inf
      %1806 = vmax.xlane.f32.xlu0 %v1805
      %v1807 = vpop.xlane.xlu0 %1806
      %v1808 = vsub.f32 %v1804, %v1807
      %v1809 = vmul.f32 %v1808, 1.442695
      %v1810 = vpow.pop %v1809
      %v1811 = vsel %vm1277, %v1810, 0.0
      %1812 = vadd.xlane.f32.xlu0 %v1811
      %v1813 = vpop.xlane.xlu0 %1812
      %v1814 = vrcp.pop %v1813
      %v1815 = vmul.f32 %v1810, %v1814
      %1816 = vrot.lane.b32.xlu0 %v1544, 88
      %v1817 = vpop.permute.xlu0 %1816
      %1818 = vrot.lane.b32.xlu0 %v1549, 88
      %v1819 = vpop.permute.xlu0 %1818
      %v1823 = vsel %vm1277, %v1815, 0
      %1825 = vmatprep.subr.mxu0 0.0
      %1826 = vmatpush1.msra.mxu0 0.0
      %1827 = vmatprep.subr.mxu0 0.0
      %1828 = vmatpush1.msra.mxu0 0.0
      %1829 = vmatprep.subr.mxu0 0.0
      %1830 = vmatpush1.msra.mxu0 0.0
      %1831 = vmatprep.subr.mxu0 0.0
      %1832 = vmatpush1.msra.mxu0 0.0
      %1833 = vmatprep.subr.mxu0 0.0
      %1834 = vmatpush1.msra.mxu0 0.0
      %1835 = vmatprep.subr.mxu0 0.0
      %1836 = vmatpush1.msra.mxu0 0.0
      %1837 = vmatprep.subr.mxu0 0.0
      %1838 = vmatpush1.msra.mxu0 0.0
      %1839 = vmatprep.subr.mxu0 0.0
      %1840 = vmatpush1.msra.mxu0 0.0
      %1841 = vmatprep.subr.mxu0 0.0
      %1842 = vmatpush1.msra.mxu0 0.0
      %1843 = vmatprep.subr.mxu0 0.0
      %1844 = vmatpush1.msra.mxu0 0.0
      %1845 = vmatprep.subr.mxu0 0.0
      %1846 = vmatpush1.msra.mxu0 0.0
      %1847 = vmatprep.subr.mxu0 0.0
      %1848 = vmatpush1.msra.mxu0 0.0
      %1849 = vmatprep.subr.mxu0 0.0
      %1850 = vmatpush1.msra.mxu0 0.0
      %1851 = vmatprep.subr.mxu0 0.0
      %1852 = vmatpush1.msra.mxu0 0.0
      %1853 = vmatprep.subr.mxu0 0.0
      %1854 = vmatpush1.msra.mxu0 %v1819
      %1855 = vmatprep.subr.mxu0 0.0
      %1856 = vmatpush1.msra.mxu0 %v1817
      %1857 = vmatprep.subr.mxu0 0.0
      %1858 = vmatpush2.msra.mxu0 0.0
      %1859 = vmatprep.subr.mxu0 0.0
      %1860 = vmatpush2.msra.mxu0 0.0
      %1861 = vmatprep.subr.mxu0 0.0
      %1862 = vmatpush2.msra.mxu0 0.0
      %1863 = vmatprep.subr.mxu0 0.0
      %1864 = vmatpush2.msra.mxu0 0.0
      %1865 = vmatprep.subr.mxu0 0.0
      %1866 = vmatpush2.msra.mxu0 0.0
      %1867 = vmatprep.subr.mxu0 0.0
      %1868 = vmatpush2.msra.mxu0 0.0
      %1869 = vmatprep.subr.mxu0 0.0
      %1870 = vmatpush2.msra.mxu0 0.0
      %1871 = vmatprep.subr.mxu0 0.0
      %1872 = vmatpush2.msra.mxu0 0.0
      %1873 = vmatprep.subr.mxu0 0.0
      %1874 = vmatpush2.msra.mxu0 0.0
      %1875 = vmatprep.subr.mxu0 0.0
      %1876 = vmatpush2.msra.mxu0 0.0
      %1877 = vmatprep.subr.mxu0 0.0
      %1878 = vmatpush2.msra.mxu0 0.0
      %1879 = vmatprep.subr.mxu0 0.0
      %1880 = vmatpush2.msra.mxu0 0.0
      %1881 = vmatprep.subr.mxu0 0.0
      %1882 = vmatpush2.msra.mxu0 0.0
      %1883 = vmatprep.subr.mxu0 0.0
      %1884 = vmatpush2.msra.mxu0 0.0
      %1885 = vmatprep.subr.mxu0 0.0
      %1886 = vmatpush2.msra.mxu0 0.0
      %1887 = vmatprep.subr.mxu0 0.0
      %1888 = vmatpush2.msra.mxu0 0.0
      %1889 = vmatprep.mubr.f32.mxu0 0.0
      %1890 = vmatmul.mubr.f32.gmra.mxu0 %v1823
      %v1891 = vpop.f32.mrf.mxu0
      %v1892 = vadd.f32 0.0, %v1891
      %v1893 = vpop.f32.mrf.mxu0
      %1894 = vdwg.mxu0
      %1895 = vrot.lane.b32.xlu0 %v1449, 112
      %v1896 = vpop.permute.xlu0 %1895
      %1897 = vrot.lane.b32.xlu0 %v1544, 112
      %v1898 = vpop.permute.xlu0 %1897
      %1899 = vrot.lane.b32.xlu0 %v1549, 112
      %v1900 = vpop.permute.xlu0 %1899
      %v1901 = vsel %vm603, %v1896, 0
      %v1903 = vsel %vm603, %v1898, 0
      %v1905 = vsel %vm603, %v1900, 0
      %1907 = vmatprep.subr.mxu0 0.0
      %1908 = vmatpush1.xpose.msra.mxu0 0.0
      %1909 = vmatprep.subr.mxu0 0.0
      %1910 = vmatpush1.xpose.msra.mxu0 0.0
      %1911 = vmatprep.subr.mxu0 0.0
      %1912 = vmatpush1.xpose.msra.mxu0 0.0
      %1913 = vmatprep.subr.mxu0 0.0
      %1914 = vmatpush1.xpose.msra.mxu0 0.0
      %1915 = vmatprep.subr.mxu0 0.0
      %1916 = vmatpush1.xpose.msra.mxu0 0.0
      %1917 = vmatprep.subr.mxu0 0.0
      %1918 = vmatpush1.xpose.msra.mxu0 0.0
      %1919 = vmatprep.subr.mxu0 0.0
      %1920 = vmatpush1.xpose.msra.mxu0 0.0
      %1921 = vmatprep.subr.mxu0 0.0
      %1922 = vmatpush1.xpose.msra.mxu0 0.0
      %1923 = vmatprep.subr.mxu0 0.0
      %1924 = vmatpush1.xpose.msra.mxu0 0.0
      %1925 = vmatprep.subr.mxu0 0.0
      %1926 = vmatpush1.xpose.msra.mxu0 0.0
      %1927 = vmatprep.subr.mxu0 0.0
      %1928 = vmatpush1.xpose.msra.mxu0 0.0
      %1929 = vmatprep.subr.mxu0 0.0
      %1930 = vmatpush1.xpose.msra.mxu0 0.0
      %1931 = vmatprep.subr.mxu0 0.0
      %1932 = vmatpush1.xpose.msra.mxu0 0.0
      %1933 = vmatprep.subr.mxu0 0.0
      %1934 = vmatpush1.xpose.msra.mxu0 0.0
      %1935 = vmatprep.subr.mxu0 0.0
      %1936 = vmatpush1.xpose.msra.mxu0 %v1905
      %1937 = vmatprep.subr.mxu0 0.0
      %1938 = vmatpush1.xpose.msra.mxu0 %v1903
      %1939 = vmatprep.subr.mxu0 0.0
      %1940 = vmatpush2.xpose.msra.mxu0 0.0
      %1941 = vmatprep.subr.mxu0 0.0
      %1942 = vmatpush2.xpose.msra.mxu0 0.0
      %1943 = vmatprep.subr.mxu0 0.0
      %1944 = vmatpush2.xpose.msra.mxu0 0.0
      %1945 = vmatprep.subr.mxu0 0.0
      %1946 = vmatpush2.xpose.msra.mxu0 0.0
      %1947 = vmatprep.subr.mxu0 0.0
      %1948 = vmatpush2.xpose.msra.mxu0 0.0
      %1949 = vmatprep.subr.mxu0 0.0
      %1950 = vmatpush2.xpose.msra.mxu0 0.0
      %1951 = vmatprep.subr.mxu0 0.0
      %1952 = vmatpush2.xpose.msra.mxu0 0.0
      %1953 = vmatprep.subr.mxu0 0.0
      %1954 = vmatpush2.xpose.msra.mxu0 0.0
      %1955 = vmatprep.subr.mxu0 0.0
      %1956 = vmatpush2.xpose.msra.mxu0 0.0
      %1957 = vmatprep.subr.mxu0 0.0
      %1958 = vmatpush2.xpose.msra.mxu0 0.0
      %1959 = vmatprep.subr.mxu0 0.0
      %1960 = vmatpush2.xpose.msra.mxu0 0.0
      %1961 = vmatprep.subr.mxu0 0.0
      %1962 = vmatpush2.xpose.msra.mxu0 0.0
      %1963 = vmatprep.subr.mxu0 0.0
      %1964 = vmatpush2.xpose.msra.mxu0 0.0
      %1965 = vmatprep.subr.mxu0 0.0
      %1966 = vmatpush2.xpose.msra.mxu0 0.0
      %1967 = vmatprep.subr.mxu0 0.0
      %1968 = vmatpush2.xpose.msra.mxu0 0.0
      %1969 = vmatprep.subr.mxu0 0.0
      %1970 = vmatpush2.xpose.msra.mxu0 0.0
      %1971 = vmatprep.mubr.f32.mxu0 0.0
      %1972 = vmatmul.mubr.f32.gmra.mxu0 %v1901
      %v1973 = vpop.f32.mrf.mxu0
      %v1974 = vadd.f32 0.0, %v1973
      %v1975 = vpop.f32.mrf.mxu0
      %1976 = vdwg.mxu0
      %v1977 = vmul.f32 %v1974, 0.35355338
      %v1978 = vsel %vm1277, %v1977, -inf
      %1979 = vmax.xlane.f32.xlu0 %v1978
      %v1980 = vpop.xlane.xlu0 %1979
      %v1981 = vsub.f32 %v1977, %v1980
      %v1982 = vmul.f32 %v1981, 1.442695
      %v1983 = vpow.pop %v1982
      %v1984 = vsel %vm1277, %v1983, 0.0
      %1985 = vadd.xlane.f32.xlu0 %v1984
      %v1986 = vpop.xlane.xlu0 %1985
      %v1987 = vrcp.pop %v1986
      %v1988 = vmul.f32 %v1983, %v1987
      %1989 = vrot.lane.b32.xlu0 %v1544, 80
      %v1990 = vpop.permute.xlu0 %1989
      %1991 = vrot.lane.b32.xlu0 %v1549, 80
      %v1992 = vpop.permute.xlu0 %1991
      %v1996 = vsel %vm1277, %v1988, 0
      %1998 = vmatprep.subr.mxu0 0.0
      %1999 = vmatpush1.msra.mxu0 0.0
      %2000 = vmatprep.subr.mxu0 0.0
      %2001 = vmatpush1.msra.mxu0 0.0
      %2002 = vmatprep.subr.mxu0 0.0
      %2003 = vmatpush1.msra.mxu0 0.0
      %2004 = vmatprep.subr.mxu0 0.0
      %2005 = vmatpush1.msra.mxu0 0.0
      %2006 = vmatprep.subr.mxu0 0.0
      %2007 = vmatpush1.msra.mxu0 0.0
      %2008 = vmatprep.subr.mxu0 0.0
      %2009 = vmatpush1.msra.mxu0 0.0
      %2010 = vmatprep.subr.mxu0 0.0
      %2011 = vmatpush1.msra.mxu0 0.0
      %2012 = vmatprep.subr.mxu0 0.0
      %2013 = vmatpush1.msra.mxu0 0.0
      %2014 = vmatprep.subr.mxu0 0.0
      %2015 = vmatpush1.msra.mxu0 0.0
      %2016 = vmatprep.subr.mxu0 0.0
      %2017 = vmatpush1.msra.mxu0 0.0
      %2018 = vmatprep.subr.mxu0 0.0
      %2019 = vmatpush1.msra.mxu0 0.0
      %2020 = vmatprep.subr.mxu0 0.0
      %2021 = vmatpush1.msra.mxu0 0.0
      %2022 = vmatprep.subr.mxu0 0.0
      %2023 = vmatpush1.msra.mxu0 0.0
      %2024 = vmatprep.subr.mxu0 0.0
      %2025 = vmatpush1.msra.mxu0 0.0
      %2026 = vmatprep.subr.mxu0 0.0
      %2027 = vmatpush1.msra.mxu0 %v1992
      %2028 = vmatprep.subr.mxu0 0.0
      %2029 = vmatpush1.msra.mxu0 %v1990
      %2030 = vmatprep.subr.mxu0 0.0
      %2031 = vmatpush2.msra.mxu0 0.0
      %2032 = vmatprep.subr.mxu0 0.0
      %2033 = vmatpush2.msra.mxu0 0.0
      %2034 = vmatprep.subr.mxu0 0.0
      %2035 = vmatpush2.msra.mxu0 0.0
      %2036 = vmatprep.subr.mxu0 0.0
      %2037 = vmatpush2.msra.mxu0 0.0
      %2038 = vmatprep.subr.mxu0 0.0
      %2039 = vmatpush2.msra.mxu0 0.0
      %2040 = vmatprep.subr.mxu0 0.0
      %2041 = vmatpush2.msra.mxu0 0.0
      %2042 = vmatprep.subr.mxu0 0.0
      %2043 = vmatpush2.msra.mxu0 0.0
      %2044 = vmatprep.subr.mxu0 0.0
      %2045 = vmatpush2.msra.mxu0 0.0
      %2046 = vmatprep.subr.mxu0 0.0
      %2047 = vmatpush2.msra.mxu0 0.0
      %2048 = vmatprep.subr.mxu0 0.0
      %2049 = vmatpush2.msra.mxu0 0.0
      %2050 = vmatprep.subr.mxu0 0.0
      %2051 = vmatpush2.msra.mxu0 0.0
      %2052 = vmatprep.subr.mxu0 0.0
      %2053 = vmatpush2.msra.mxu0 0.0
      %2054 = vmatprep.subr.mxu0 0.0
      %2055 = vmatpush2.msra.mxu0 0.0
      %2056 = vmatprep.subr.mxu0 0.0
      %2057 = vmatpush2.msra.mxu0 0.0
      %2058 = vmatprep.subr.mxu0 0.0
      %2059 = vmatpush2.msra.mxu0 0.0
      %2060 = vmatprep.subr.mxu0 0.0
      %2061 = vmatpush2.msra.mxu0 0.0
      %2062 = vmatprep.mubr.f32.mxu0 0.0
      %2063 = vmatmul.mubr.f32.gmra.mxu0 %v1996
      %v2064 = vpop.f32.mrf.mxu0
      %v2065 = vadd.f32 0.0, %v2064
      %v2066 = vpop.f32.mrf.mxu0
      %2067 = vdwg.mxu0
      %2068 = vrot.lane.b32.xlu0 %v1449, 104
      %v2069 = vpop.permute.xlu0 %2068
      %2070 = vrot.lane.b32.xlu0 %v1544, 104
      %v2071 = vpop.permute.xlu0 %2070
      %2072 = vrot.lane.b32.xlu0 %v1549, 104
      %v2073 = vpop.permute.xlu0 %2072
      %v2074 = vsel %vm603, %v2069, 0
      %v2076 = vsel %vm603, %v2071, 0
      %v2078 = vsel %vm603, %v2073, 0
      %2080 = vmatprep.subr.mxu0 0.0
      %2081 = vmatpush1.xpose.msra.mxu0 0.0
      %2082 = vmatprep.subr.mxu0 0.0
      %2083 = vmatpush1.xpose.msra.mxu0 0.0
      %2084 = vmatprep.subr.mxu0 0.0
      %2085 = vmatpush1.xpose.msra.mxu0 0.0
      %2086 = vmatprep.subr.mxu0 0.0
      %2087 = vmatpush1.xpose.msra.mxu0 0.0
      %2088 = vmatprep.subr.mxu0 0.0
      %2089 = vmatpush1.xpose.msra.mxu0 0.0
      %2090 = vmatprep.subr.mxu0 0.0
      %2091 = vmatpush1.xpose.msra.mxu0 0.0
      %2092 = vmatprep.subr.mxu0 0.0
      %2093 = vmatpush1.xpose.msra.mxu0 0.0
      %2094 = vmatprep.subr.mxu0 0.0
      %2095 = vmatpush1.xpose.msra.mxu0 0.0
      %2096 = vmatprep.subr.mxu0 0.0
      %2097 = vmatpush1.xpose.msra.mxu0 0.0
      %2098 = vmatprep.subr.mxu0 0.0
      %2099 = vmatpush1.xpose.msra.mxu0 0.0
      %2100 = vmatprep.subr.mxu0 0.0
      %2101 = vmatpush1.xpose.msra.mxu0 0.0
      %2102 = vmatprep.subr.mxu0 0.0
      %2103 = vmatpush1.xpose.msra.mxu0 0.0
      %2104 = vmatprep.subr.mxu0 0.0
      %2105 = vmatpush1.xpose.msra.mxu0 0.0
      %2106 = vmatprep.subr.mxu0 0.0
      %2107 = vmatpush1.xpose.msra.mxu0 0.0
      %2108 = vmatprep.subr.mxu0 0.0
      %2109 = vmatpush1.xpose.msra.mxu0 %v2078
      %2110 = vmatprep.subr.mxu0 0.0
      %2111 = vmatpush1.xpose.msra.mxu0 %v2076
      %2112 = vmatprep.subr.mxu0 0.0
      %2113 = vmatpush2.xpose.msra.mxu0 0.0
      %2114 = vmatprep.subr.mxu0 0.0
      %2115 = vmatpush2.xpose.msra.mxu0 0.0
      %2116 = vmatprep.subr.mxu0 0.0
      %2117 = vmatpush2.xpose.msra.mxu0 0.0
      %2118 = vmatprep.subr.mxu0 0.0
      %2119 = vmatpush2.xpose.msra.mxu0 0.0
      %2120 = vmatprep.subr.mxu0 0.0
      %2121 = vmatpush2.xpose.msra.mxu0 0.0
      %2122 = vmatprep.subr.mxu0 0.0
      %2123 = vmatpush2.xpose.msra.mxu0 0.0
      %2124 = vmatprep.subr.mxu0 0.0
      %2125 = vmatpush2.xpose.msra.mxu0 0.0
      %2126 = vmatprep.subr.mxu0 0.0
      %2127 = vmatpush2.xpose.msra.mxu0 0.0
      %2128 = vmatprep.subr.mxu0 0.0
      %2129 = vmatpush2.xpose.msra.mxu0 0.0
      %2130 = vmatprep.subr.mxu0 0.0
      %2131 = vmatpush2.xpose.msra.mxu0 0.0
      %2132 = vmatprep.subr.mxu0 0.0
      %2133 = vmatpush2.xpose.msra.mxu0 0.0
      %2134 = vmatprep.subr.mxu0 0.0
      %2135 = vmatpush2.xpose.msra.mxu0 0.0
      %2136 = vmatprep.subr.mxu0 0.0
      %2137 = vmatpush2.xpose.msra.mxu0 0.0
      %2138 = vmatprep.subr.mxu0 0.0
      %2139 = vmatpush2.xpose.msra.mxu0 0.0
      %2140 = vmatprep.subr.mxu0 0.0
      %2141 = vmatpush2.xpose.msra.mxu0 0.0
      %2142 = vmatprep.subr.mxu0 0.0
      %2143 = vmatpush2.xpose.msra.mxu0 0.0
      %2144 = vmatprep.mubr.f32.mxu0 0.0
      %2145 = vmatmul.mubr.f32.gmra.mxu0 %v2074
      %v2146 = vpop.f32.mrf.mxu0
      %v2147 = vadd.f32 0.0, %v2146
      %v2148 = vpop.f32.mrf.mxu0
      %2149 = vdwg.mxu0
      %v2150 = vmul.f32 %v2147, 0.35355338
      %v2151 = vsel %vm1277, %v2150, -inf
      %2152 = vmax.xlane.f32.xlu0 %v2151
      %v2153 = vpop.xlane.xlu0 %2152
      %v2154 = vsub.f32 %v2150, %v2153
      %v2155 = vmul.f32 %v2154, 1.442695
      %v2156 = vpow.pop %v2155
      %v2157 = vsel %vm1277, %v2156, 0.0
      %2158 = vadd.xlane.f32.xlu0 %v2157
      %v2159 = vpop.xlane.xlu0 %2158
      %v2160 = vrcp.pop %v2159
      %v2161 = vmul.f32 %v2156, %v2160
      %2162 = vrot.lane.b32.xlu0 %v1544, 72
      %v2163 = vpop.permute.xlu0 %2162
      %2164 = vrot.lane.b32.xlu0 %v1549, 72
      %v2165 = vpop.permute.xlu0 %2164
      %v2169 = vsel %vm1277, %v2161, 0
      %2171 = vmatprep.subr.mxu0 0.0
      %2172 = vmatpush1.msra.mxu0 0.0
      %2173 = vmatprep.subr.mxu0 0.0
      %2174 = vmatpush1.msra.mxu0 0.0
      %2175 = vmatprep.subr.mxu0 0.0
      %2176 = vmatpush1.msra.mxu0 0.0
      %2177 = vmatprep.subr.mxu0 0.0
      %2178 = vmatpush1.msra.mxu0 0.0
      %2179 = vmatprep.subr.mxu0 0.0
      %2180 = vmatpush1.msra.mxu0 0.0
      %2181 = vmatprep.subr.mxu0 0.0
      %2182 = vmatpush1.msra.mxu0 0.0
      %2183 = vmatprep.subr.mxu0 0.0
      %2184 = vmatpush1.msra.mxu0 0.0
      %2185 = vmatprep.subr.mxu0 0.0
      %2186 = vmatpush1.msra.mxu0 0.0
      %2187 = vmatprep.subr.mxu0 0.0
      %2188 = vmatpush1.msra.mxu0 0.0
      %2189 = vmatprep.subr.mxu0 0.0
      %2190 = vmatpush1.msra.mxu0 0.0
      %2191 = vmatprep.subr.mxu0 0.0
      %2192 = vmatpush1.msra.mxu0 0.0
      %2193 = vmatprep.subr.mxu0 0.0
      %2194 = vmatpush1.msra.mxu0 0.0
      %2195 = vmatprep.subr.mxu0 0.0
      %2196 = vmatpush1.msra.mxu0 0.0
      %2197 = vmatprep.subr.mxu0 0.0
      %2198 = vmatpush1.msra.mxu0 0.0
      %2199 = vmatprep.subr.mxu0 0.0
      %2200 = vmatpush1.msra.mxu0 %v2165
      %2201 = vmatprep.subr.mxu0 0.0
      %2202 = vmatpush1.msra.mxu0 %v2163
      %2203 = vmatprep.subr.mxu0 0.0
      %2204 = vmatpush2.msra.mxu0 0.0
      %2205 = vmatprep.subr.mxu0 0.0
      %2206 = vmatpush2.msra.mxu0 0.0
      %2207 = vmatprep.subr.mxu0 0.0
      %2208 = vmatpush2.msra.mxu0 0.0
      %2209 = vmatprep.subr.mxu0 0.0
      %2210 = vmatpush2.msra.mxu0 0.0
      %2211 = vmatprep.subr.mxu0 0.0
      %2212 = vmatpush2.msra.mxu0 0.0
      %2213 = vmatprep.subr.mxu0 0.0
      %2214 = vmatpush2.msra.mxu0 0.0
      %2215 = vmatprep.subr.mxu0 0.0
      %2216 = vmatpush2.msra.mxu0 0.0
      %2217 = vmatprep.subr.mxu0 0.0
      %2218 = vmatpush2.msra.mxu0 0.0
      %2219 = vmatprep.subr.mxu0 0.0
      %2220 = vmatpush2.msra.mxu0 0.0
      %2221 = vmatprep.subr.mxu0 0.0
      %2222 = vmatpush2.msra.mxu0 0.0
      %2223 = vmatprep.subr.mxu0 0.0
      %2224 = vmatpush2.msra.mxu0 0.0
      %2225 = vmatprep.subr.mxu0 0.0
      %2226 = vmatpush2.msra.mxu0 0.0
      %2227 = vmatprep.subr.mxu0 0.0
      %2228 = vmatpush2.msra.mxu0 0.0
      %2229 = vmatprep.subr.mxu0 0.0
      %2230 = vmatpush2.msra.mxu0 0.0
      %2231 = vmatprep.subr.mxu0 0.0
      %2232 = vmatpush2.msra.mxu0 0.0
      %2233 = vmatprep.subr.mxu0 0.0
      %2234 = vmatpush2.msra.mxu0 0.0
      %2235 = vmatprep.mubr.f32.mxu0 0.0
      %2236 = vmatmul.mubr.f32.gmra.mxu0 %v2169
      %v2237 = vpop.f32.mrf.mxu0
      %v2238 = vadd.f32 0.0, %v2237
      %v2239 = vpop.f32.mrf.mxu0
      %2240 = vdwg.mxu0
      %2242 = vrot.lane.b32.xlu0 %v1892, 8
      %v2243 = vpop.permute.xlu0 %2242
      %2246 = vrot.lane.b32.xlu0 %v2065, 16
      %v2247 = vpop.permute.xlu0 %2246
      %2250 = vrot.lane.b32.xlu0 %v2238, 24
      %v2251 = vpop.permute.xlu0 %2250
      %v2253 = vsel %vm603, %v1719, %v2243
      %v2254 = vsel %vm1277, %v2253, %v2247
      %v2255 = vsel %vm1279, %v2254, %v2251
      %v2256 = vld [vmem:[%s8] sm:$0xff]
      %v2257 = vld [vmem:[%s8 + $0x8] sm:$0xff]
      %v2258 = vld [vmem:[%s8 + $0x10] sm:$0xff]
      %v2259 = vld [vmem:[%s8 + $0x18] sm:$0xff]
      %v2260 = vld [vmem:[%s9] sm:$0x1]
      %v2262 = vlaneseq
      %v2263 = vshrl.u32 %v2262, 7
      %v2264 = vsub.s32 0, %v2263
      %v2265 = vrot.slane %v2260, %v2264
      %v2268 = vsel %vm526, %v2255, 0
      %2270 = vmatprep.subr.mxu0 0.0
      %2271 = vmatpush1.msra.mxu0 0.0
      %2272 = vmatprep.subr.mxu0 0.0
      %2273 = vmatpush1.msra.mxu0 0.0
      %2274 = vmatprep.subr.mxu0 0.0
      %2275 = vmatpush1.msra.mxu0 0.0
      %2276 = vmatprep.subr.mxu0 0.0
      %2277 = vmatpush1.msra.mxu0 0.0
      %2278 = vmatprep.subr.mxu0 0.0
      %2279 = vmatpush1.msra.mxu0 0.0
      %2280 = vmatprep.subr.mxu0 0.0
      %2281 = vmatpush1.msra.mxu0 0.0
      %2282 = vmatprep.subr.mxu0 0.0
      %2283 = vmatpush1.msra.mxu0 0.0
      %2284 = vmatprep.subr.mxu0 0.0
      %2285 = vmatpush1.msra.mxu0 0.0
      %2286 = vmatprep.subr.mxu0 0.0
      %2287 = vmatpush1.msra.mxu0 0.0
      %2288 = vmatprep.subr.mxu0 0.0
      %2289 = vmatpush1.msra.mxu0 0.0
      %2290 = vmatprep.subr.mxu0 0.0
      %2291 = vmatpush1.msra.mxu0 0.0
      %2292 = vmatprep.subr.mxu0 0.0
      %2293 = vmatpush1.msra.mxu0 0.0
      %2294 = vmatprep.subr.mxu0 0.0
      %2295 = vmatpush1.msra.mxu0 %v2259
      %2296 = vmatprep.subr.mxu0 0.0
      %2297 = vmatpush1.msra.mxu0 %v2258
      %2298 = vmatprep.subr.mxu0 0.0
      %2299 = vmatpush1.msra.mxu0 %v2257
      %2300 = vmatprep.subr.mxu0 0.0
      %2301 = vmatpush1.msra.mxu0 %v2256
      %2302 = vmatprep.subr.mxu0 0.0
      %2303 = vmatpush2.msra.mxu0 0.0
      %2304 = vmatprep.subr.mxu0 0.0
      %2305 = vmatpush2.msra.mxu0 0.0
      %2306 = vmatprep.subr.mxu0 0.0
      %2307 = vmatpush2.msra.mxu0 0.0
      %2308 = vmatprep.subr.mxu0 0.0
      %2309 = vmatpush2.msra.mxu0 0.0
      %2310 = vmatprep.subr.mxu0 0.0
      %2311 = vmatpush2.msra.mxu0 0.0
      %2312 = vmatprep.subr.mxu0 0.0
      %2313 = vmatpush2.msra.mxu0 0.0
      %2314 = vmatprep.subr.mxu0 0.0
      %2315 = vmatpush2.msra.mxu0 0.0
      %2316 = vmatprep.subr.mxu0 0.0
      %2317 = vmatpush2.msra.mxu0 0.0
      %2318 = vmatprep.subr.mxu0 0.0
      %2319 = vmatpush2.msra.mxu0 0.0
      %2320 = vmatprep.subr.mxu0 0.0
      %2321 = vmatpush2.msra.mxu0 0.0
      %2322 = vmatprep.subr.mxu0 0.0
      %2323 = vmatpush2.msra.mxu0 0.0
      %2324 = vmatprep.subr.mxu0 0.0
      %2325 = vmatpush2.msra.mxu0 0.0
      %2326 = vmatprep.subr.mxu0 0.0
      %2327 = vmatpush2.msra.mxu0 0.0
      %2328 = vmatprep.subr.mxu0 0.0
      %2329 = vmatpush2.msra.mxu0 0.0
      %2330 = vmatprep.subr.mxu0 0.0
      %2331 = vmatpush2.msra.mxu0 0.0
      %2332 = vmatprep.subr.mxu0 0.0
      %2333 = vmatpush2.msra.mxu0 0.0
      %2334 = vmatprep.mubr.f32.mxu0 0.0
      %2335 = vmatmul.mubr.f32.gmra.mxu0 %v2268
      %v2336 = vpop.f32.mrf.mxu0
      %v2337 = vadd.f32 %v2265, %v2336
      %v2338 = vpop.f32.mrf.mxu0
      %2339 = vdwg.mxu0
      %v2340 = vmul.f32 %v1365, %v2337
      %v2341 = vadd.f32 %v1367, %v2340
      %v2342 = vld [vmem:[%s10] sm:$0xff]
      %v2343 = vld [vmem:[%s10 + $0x8] sm:$0xff]
      %v2344 = vld [vmem:[%s10 + $0x10] sm:$0xff]
      %v2345 = vld [vmem:[%s10 + $0x18] sm:$0xff]
      %v2346 = vld [vmem:[%s11] sm:$0x1]
      %v2348 = vlaneseq
      %v2349 = vshrl.u32 %v2348, 7
      %v2350 = vsub.s32 0, %v2349
      %v2351 = vrot.slane %v2346, %v2350
      %v2354 = vsel %vm526, %v2341, 0
      %2356 = vmatprep.subr.mxu0 0.0
      %2357 = vmatpush1.msra.mxu0 0.0
      %2358 = vmatprep.subr.mxu0 0.0
      %2359 = vmatpush1.msra.mxu0 0.0
      %2360 = vmatprep.subr.mxu0 0.0
      %2361 = vmatpush1.msra.mxu0 0.0
      %2362 = vmatprep.subr.mxu0 0.0
      %2363 = vmatpush1.msra.mxu0 0.0
      %2364 = vmatprep.subr.mxu0 0.0
      %2365 = vmatpush1.msra.mxu0 0.0
      %2366 = vmatprep.subr.mxu0 0.0
      %2367 = vmatpush1.msra.mxu0 0.0
      %2368 = vmatprep.subr.mxu0 0.0
      %2369 = vmatpush1.msra.mxu0 0.0
      %2370 = vmatprep.subr.mxu0 0.0
      %2371 = vmatpush1.msra.mxu0 0.0
      %2372 = vmatprep.subr.mxu0 0.0
      %2373 = vmatpush1.msra.mxu0 0.0
      %2374 = vmatprep.subr.mxu0 0.0
      %2375 = vmatpush1.msra.mxu0 0.0
      %2376 = vmatprep.subr.mxu0 0.0
      %2377 = vmatpush1.msra.mxu0 0.0
      %2378 = vmatprep.subr.mxu0 0.0
      %2379 = vmatpush1.msra.mxu0 0.0
      %2380 = vmatprep.subr.mxu0 0.0
      %2381 = vmatpush1.msra.mxu0 %v2345
      %2382 = vmatprep.subr.mxu0 0.0
      %2383 = vmatpush1.msra.mxu0 %v2344
      %2384 = vmatprep.subr.mxu0 0.0
      %2385 = vmatpush1.msra.mxu0 %v2343
      %2386 = vmatprep.subr.mxu0 0.0
      %2387 = vmatpush1.msra.mxu0 %v2342
      %2388 = vmatprep.subr.mxu0 0.0
      %2389 = vmatpush2.msra.mxu0 0.0
      %2390 = vmatprep.subr.mxu0 0.0
      %2391 = vmatpush2.msra.mxu0 0.0
      %2392 = vmatprep.subr.mxu0 0.0
      %2393 = vmatpush2.msra.mxu0 0.0
      %2394 = vmatprep.subr.mxu0 0.0
      %2395 = vmatpush2.msra.mxu0 0.0
      %2396 = vmatprep.subr.mxu0 0.0
      %2397 = vmatpush2.msra.mxu0 0.0
      %2398 = vmatprep.subr.mxu0 0.0
      %2399 = vmatpush2.msra.mxu0 0.0
      %2400 = vmatprep.subr.mxu0 0.0
      %2401 = vmatpush2.msra.mxu0 0.0
      %2402 = vmatprep.subr.mxu0 0.0
      %2403 = vmatpush2.msra.mxu0 0.0
      %2404 = vmatprep.subr.mxu0 0.0
      %2405 = vmatpush2.msra.mxu0 0.0
      %2406 = vmatprep.subr.mxu0 0.0
      %2407 = vmatpush2.msra.mxu0 0.0
      %2408 = vmatprep.subr.mxu0 0.0
      %2409 = vmatpush2.msra.mxu0 0.0
      %2410 = vmatprep.subr.mxu0 0.0
      %2411 = vmatpush2.msra.mxu0 0.0
      %2412 = vmatprep.subr.mxu0 0.0
      %2413 = vmatpush2.msra.mxu0 0.0
      %2414 = vmatprep.subr.mxu0 0.0
      %2415 = vmatpush2.msra.mxu0 0.0
      %2416 = vmatprep.subr.mxu0 0.0
      %2417 = vmatpush2.msra.mxu0 0.0
      %2418 = vmatprep.subr.mxu0 0.0
      %2419 = vmatpush2.msra.mxu0 0.0
      %2420 = vmatprep.mubr.f32.mxu0 0.0
      %2421 = vmatmul.mubr.f32.gmra.mxu0 %v2354
      %v2422 = vpop.f32.mrf.mxu0
      %v2423 = vadd.f32 %v2351, %v2422
      %v2424 = vpop.f32.mrf.mxu0
      %2425 = vdwg.mxu0
      %v2426 = vmax.f32 %v2423, 0.0
      %v2427 = vld [vmem:[%s12] sm:$0xff]
      %v2428 = vld [vmem:[%s12 + $0x8] sm:$0xff]
      %v2429 = vld [vmem:[%s12 + $0x10] sm:$0xff]
      %v2430 = vld [vmem:[%s12 + $0x18] sm:$0xff]
      %v2431 = vld [vmem:[%s12 + $0x20] sm:$0xff]
      %v2432 = vld [vmem:[%s12 + $0x28] sm:$0xff]
      %v2433 = vld [vmem:[%s12 + $0x30] sm:$0xff]
      %v2434 = vld [vmem:[%s12 + $0x38] sm:$0xff]
      %v2435 = vld [vmem:[%s13] sm:$0x1]
      %v2437 = vlaneseq
      %v2438 = vshrl.u32 %v2437, 7
      %v2439 = vsub.s32 0, %v2438
      %v2440 = vrot.slane %v2435, %v2439
      %vm2442 = vcmask 523264
      %v2444 = vsel %vm2442, %v2426, 0
      %2446 = vmatprep.subr.mxu0 0.0
      %2447 = vmatpush1.msra.mxu0 0.0
      %2448 = vmatprep.subr.mxu0 0.0
      %2449 = vmatpush1.msra.mxu0 0.0
      %2450 = vmatprep.subr.mxu0 0.0
      %2451 = vmatpush1.msra.mxu0 0.0
      %2452 = vmatprep.subr.mxu0 0.0
      %2453 = vmatpush1.msra.mxu0 0.0
      %2454 = vmatprep.subr.mxu0 0.0
      %2455 = vmatpush1.msra.mxu0 0.0
      %2456 = vmatprep.subr.mxu0 0.0
      %2457 = vmatpush1.msra.mxu0 0.0
      %2458 = vmatprep.subr.mxu0 0.0
      %2459 = vmatpush1.msra.mxu0 0.0
      %2460 = vmatprep.subr.mxu0 0.0
      %2461 = vmatpush1.msra.mxu0 0.0
      %2462 = vmatprep.subr.mxu0 0.0
      %2463 = vmatpush1.msra.mxu0 %v2434
      %2464 = vmatprep.subr.mxu0 0.0
      %2465 = vmatpush1.msra.mxu0 %v2433
      %2466 = vmatprep.subr.mxu0 0.0
      %2467 = vmatpush1.msra.mxu0 %v2432
      %2468 = vmatprep.subr.mxu0 0.0
      %2469 = vmatpush1.msra.mxu0 %v2431
      %2470 = vmatprep.subr.mxu0 0.0
      %2471 = vmatpush1.msra.mxu0 %v2430
      %2472 = vmatprep.subr.mxu0 0.0
      %2473 = vmatpush1.msra.mxu0 %v2429
      %2474 = vmatprep.subr.mxu0 0.0
      %2475 = vmatpush1.msra.mxu0 %v2428
      %2476 = vmatprep.subr.mxu0 0.0
      %2477 = vmatpush1.msra.mxu0 %v2427
      %2478 = vmatprep.subr.mxu0 0.0
      %2479 = vmatpush2.msra.mxu0 0.0
      %2480 = vmatprep.subr.mxu0 0.0
      %2481 = vmatpush2.msra.mxu0 0.0
      %2482 = vmatprep.subr.mxu0 0.0
      %2483 = vmatpush2.msra.mxu0 0.0
      %2484 = vmatprep.subr.mxu0 0.0
      %2485 = vmatpush2.msra.mxu0 0.0
      %2486 = vmatprep.subr.mxu0 0.0
      %2487 = vmatpush2.msra.mxu0 0.0
      %2488 = vmatprep.subr.mxu0 0.0
      %2489 = vmatpush2.msra.mxu0 0.0
      %2490 = vmatprep.subr.mxu0 0.0
      %2491 = vmatpush2.msra.mxu0 0.0
      %2492 = vmatprep.subr.mxu0 0.0
      %2493 = vmatpush2.msra.mxu0 0.0
      %2494 = vmatprep.subr.mxu0 0.0
      %2495 = vmatpush2.msra.mxu0 0.0
      %2496 = vmatprep.subr.mxu0 0.0
      %2497 = vmatpush2.msra.mxu0 0.0
      %2498 = vmatprep.subr.mxu0 0.0
      %2499 = vmatpush2.msra.mxu0 0.0
      %2500 = vmatprep.subr.mxu0 0.0
      %2501 = vmatpush2.msra.mxu0 0.0
      %2502 = vmatprep.subr.mxu0 0.0
      %2503 = vmatpush2.msra.mxu0 0.0
      %2504 = vmatprep.subr.mxu0 0.0
      %2505 = vmatpush2.msra.mxu0 0.0
      %2506 = vmatprep.subr.mxu0 0.0
      %2507 = vmatpush2.msra.mxu0 0.0
      %2508 = vmatprep.subr.mxu0 0.0
      %2509 = vmatpush2.msra.mxu0 0.0
      %2510 = vmatprep.mubr.f32.mxu0 0.0
      %2511 = vmatmul.mubr.f32.gmra.mxu0 %v2444
      %v2512 = vpop.f32.mrf.mxu0
      %v2513 = vadd.f32 %v2440, %v2512
      %v2514 = vpop.f32.mrf.mxu0
      %2515 = vdwg.mxu0
      %v2516 = vmul.f32 %v1365, %v2513
      %v2517 = vadd.f32 %v2341, %v2516
      %2518 = vst.msk [vmem:[%s510] sm:$0xff] %vm526, %v2517
      %p2519 = scmp.lt.s32.totalorder %s27, 1
      %s2520 = scalar_select %p2519, %s27, 1
      %s2521 = smul.addr %s2520, 8
      %s2522 = scalar_lea.vmem %s15, %s2521
      // Predicated region
      $region81: #{rztx_decoder_layer.1} parent=79 // pred_check
        %p2523 = pneg %p370
      $region82: #{rztx_decoder_layer.1} parent=79 // pred_check_branch
        %2525 = sbr.rel (%p2523) target = $region84
      $region83: #{rztx_decoder_layer.1} parent=79 // pred_region
        _
      $region84: #{rztx_decoder_layer.1} parent=79 // pred_fallthru
        _
    $region80: #{rztx_decoder_layer.1} parent=5 // pred_fallthru
      _
    %p2526 = scmp.le.s32.totalorder 2, %s22
    // Predicated region
    $region85: #{rztx_decoder_layer.1} parent=5 // pred_check
      %p2527 = pneg %p2526
    $region86: #{rztx_decoder_layer.1} parent=5 // pred_check_branch
      %2529 = sbr.rel (%p2527) target = $region88
    $region87: #{rztx_decoder_layer.1} parent=5 // pred_region
      %s2530 = ssub.s32 %s22, 2
      // Predicated region
      $region89: #{rztx_decoder_layer.1} parent=87 // pred_check
        %p2531 = pneg %p376
      $region90: #{rztx_decoder_layer.1} parent=87 // pred_check_branch
        %2533 = sbr.rel (%p2531) target = $region92
      $region91: #{rztx_decoder_layer.1} parent=87 // pred_region
        %p2534 = scmp.lt.s32.totalorder %s28, 1
        %s2535 = scalar_select %p2534, %s28, 1
        %s2536 = smul.addr %s2535, 8
        %s2537 = scalar_lea.vmem %s15, %s2536
      $region92: #{rztx_decoder_layer.1} parent=87 // pred_fallthru
        _
    $region88: #{rztx_decoder_layer.1} parent=5 // pred_fallthru
      _
  $region6: #{rztx_decoder_layer.1} parent=0 // loop_footer
    %s26 = sadd.s32 1, %s22
  $region7: #{rztx_decoder_layer.1} parent=0 // loop_footer_branch
    %21 = sbr.rel target = $region3
  $region8: #{rztx_decoder_layer.1} parent=0 // loop_exit
    _

</llo_original>
